<compile_context>
chip_gen: v5e
topology: v5e:2x2
jax: 0.10.0
libtpu: 0.0.40
codegen_flags: <defaults>
</compile_context>

<pallas_src>
import jax
import jax.numpy as jnp
from jax.experimental import pallas as pl
from jax.experimental.pallas import tpu as pltpu


_HIGHEST = jax.lax.Precision.HIGHEST


def _dot(a, b):
    """Full-precision f32 matmul for offline folds and the plain-JAX reference."""
    return jnp.dot(a, b, precision=_HIGHEST, preferred_element_type=jnp.float32)


# --------------------------------------------------------------------------
# Offline parameter preparation (algebraic folds, done once outside the kernel)
# --------------------------------------------------------------------------
def prepare_kernel_params(params):
    hd = params["whh_f"].shape[0]          # hidden per direction
    H = 2 * hd

    def pack_gates(cols_f, cols_b):
        # [..., 4*hd] per direction (PyTorch i,f,g,o order) ->
        # [..., 8*hd] packed as [i_f i_b | f_f f_b | g_f g_b | o_f o_b]
        parts = []
        for g in range(4):
            parts.append(cols_f[..., g * hd:(g + 1) * hd])
            parts.append(cols_b[..., g * hd:(g + 1) * hd])
        return jnp.concatenate(parts, axis=-1)

    # Fold input projection + bias into the embedding table: [vocab, 8*hd] (f32).
    wih_cat = pack_gates(params["wih_f"], params["wih_b"])
    b_cat = pack_gates(params["b_f"], params["b_b"])
    proj_emb = _dot(params["emb"], wih_cat) + b_cat

    # Block-diagonal recurrent weight for the fused state [h_f | h_b]: [H, 8*hd]
    zf = jnp.zeros_like(params["whh_f"])
    zb = jnp.zeros_like(params["whh_b"])
    whh_cat = jnp.concatenate([pack_gates(params["whh_f"], zb),
                               pack_gates(zf, params["whh_b"])], axis=0)

    # Fold ctx_bridge Linear into the tok head's first Linear.
    wt1_eff = _dot(params["wbr"], params["wt1"])
    bt1_eff = _dot(params["bbr"], params["wt1"]) + params["bt1"]

    # Split wt1 by state half so the backward-direction time reversal becomes a
    # row-block permutation of the matmul OPERAND (done via Python list order
    # in the unrolled kernel) instead of per-step masked scatter stores:
    #   src(s) @ wt1 == out[s] @ wt1_fwd + out[S-1-s] @ wt1_bwd
    wt1_fwd = wt1_eff.at[hd:H, :].set(0.0)
    wt1_bwd = wt1_eff.at[0:hd, :].set(0.0)

    # Fold h_t = cat(h_bwd, h_fwd) ordering into the cls head's first Linear:
    # kernel state is [h_f | h_b], so swap the row halves of wc1.
    wc1_sw = jnp.concatenate([params["wc1"][hd:H, :], params["wc1"][:hd, :]], axis=0)

    assert params["wc2"].shape[1] == params["wt2"].shape[1], (
        "packed w2 assumes equal cls/tok label counts")

    # Pack weights (bf16 MXU operands) and biases (f32) into few DMA descriptors.
    wpack = jnp.concatenate([whh_cat, wc1_sw, wt1_fwd, wt1_bwd],
                            axis=1).astype(jnp.bfloat16)           # [H, 4H+3H]
    w2 = jnp.concatenate([params["wc2"], params["wt2"]],
                         axis=1).astype(jnp.bfloat16)               # [H, 2L]
    bpack = jnp.concatenate([params["bc1"], bt1_eff,
                             params["bc2"], params["bt2"]], axis=1)  # [1, 2H+2L]

    return dict(proj_emb=proj_emb, wpack=wpack, w2=w2, bpack=bpack)


# --------------------------------------------------------------------------
# Pallas kernel: fused bidirectional LSTM recurrence + both classifier heads.
# --------------------------------------------------------------------------
def tagger_kernel(gx_ref, v_ref, wpack_ref, w2_ref, b_ref, out_ref):
    S, B, G = gx_ref.shape          # G = 8 * hd (fused gate width)
    H = G // 4                      # 2 * hd (fused state width)
    hd = H // 2
    SB = S * B
    L = w2_ref.shape[1] // 2

    # One-time weight / bias loads (hoisted out of the serial recurrence).
    whh = wpack_ref[:, 0:G]                        # [H, G]  bf16
    wc1 = wpack_ref[:, G:G + H]                    # [H, H]  bf16
    wt1f = wpack_ref[:, G + H:G + 2 * H]           # [H, H]  bf16
    wt1b = wpack_ref[:, G + 2 * H:G + 3 * H]       # [H, H]  bf16
    wc2 = w2_ref[:, 0:L]                           # [H, L]  bf16
    wt2 = w2_ref[:, L:2 * L]                       # [H, L]  bf16
    bc1 = b_ref[:, 0:H]
    bt1 = b_ref[:, H:2 * H]
    bc2 = b_ref[:, 2 * H:2 * H + L]
    bt2 = b_ref[:, 2 * H + L:2 * H + 2 * L]

    # One-time lane masks: "forward-direction" lanes of the state / gate vectors.
    lane_h = jax.lax.broadcasted_iota(jnp.int32, (1, H), 1)
    lane_g4 = jnp.concatenate([lane_h, lane_h, lane_h, lane_h], axis=1)  # [1, G]
    fwd_state = lane_h < hd
    fwd_gate = lane_g4 < hd

    h = jnp.zeros((B, H), jnp.float32)   # fused state [h_fwd | h_bwd]
    c = jnp.zeros((B, H), jnp.float32)
    outs = []

    # Fused recurrence (unrolled): step t runs forward time t and backward time
    # S-1-t.  Nothing inside the loop touches VMEM except the two small loads.
    for t in range(S):
        # Forward gate lanes take the time-t input row, backward lanes S-1-t.
        gxt = jnp.where(fwd_gate, gx_ref[t], gx_ref[S - 1 - t])          # [B, G]
        gates = gxt + jnp.dot(h.astype(jnp.bfloat16), whh,
                              preferred_element_type=jnp.float32)

        # Full-width activations (2 EUP passes), then 32-lane-aligned slices.
        sig = jax.nn.sigmoid(gates)
        th = jnp.tanh(gates)
        i = sig[:, 0 * H:1 * H]
        f = sig[:, 1 * H:2 * H]
        g = th[:, 2 * H:3 * H]
        o = sig[:, 3 * H:4 * H]

        c_new = f * c + i * g
        h_new = o * jnp.tanh(c_new)

        # Per-(batch, direction) validity built in-kernel from the raw [B,S] mask.
        vf = v_ref[:, t:t + 1]                      # [B, 1]
        vb = v_ref[:, S - 1 - t:S - t]              # [B, 1]
        v = jnp.where(fwd_state, vf, vb)            # [B, H], values in {0, 1}
        upd = v > 0.5
        h = jnp.where(upd, h_new, h)                # padded steps keep state
        c = jnp.where(upd, c_new, c)
        outs.append(v * h_new)                      # padded steps emit exact zeros

    # --- tok head (ctx_bridge already folded into wt1; bwd time reversal is the
    #     reversed operand order of the second matmul) ---
    X = jnp.concatenate(outs, axis=0).astype(jnp.bfloat16)        # [S*B, H]
    Xr = jnp.concatenate(outs[::-1], axis=0).astype(jnp.bfloat16)  # time-reversed
    t1 = jnp.maximum(
        jnp.dot(X, wt1f, preferred_element_type=jnp.float32)
        + jnp.dot(Xr, wt1b, preferred_element_type=jnp.float32) + bt1, 0.0)
    tok = jnp.dot(t1.astype(jnp.bfloat16), wt2,
                  preferred_element_type=jnp.float32) + bt2        # [S*B, L]

    # --- cls head on the final fused state (wc1 rows pre-swapped for [h_b|h_f]) ---
    h1 = jnp.maximum(
        jnp.dot(h.astype(jnp.bfloat16), wc1,
                preferred_element_type=jnp.float32) + bc1, 0.0)
    cls = jnp.dot(h1.astype(jnp.bfloat16), wc2,
                  preferred_element_type=jnp.float32) + bc2        # [B, L]

    # Single merged output slab: rows [0:S*B] = tok, rows [S*B:S*B+B] = cls.
    out_ref[...] = jnp.concatenate([tok, cls], axis=0)


def tagger_forward(params, input_ids, attention_mask, kparams=None):
    """Pallas-backed forward of TaggerFromDebiaser (inference)."""
    if kparams is None:
        kparams = prepare_kernel_params(params)

    B, S = input_ids.shape
    H = kparams["wpack"].shape[0]          # 2 * hd
    L = kparams["w2"].shape[1] // 2

    # Glue: gather the PRE-PROJECTED embedding rows (bias already folded in);
    # transposed indices give [S, B, G] directly (no standalone transpose op).
    # TODO(synk): could be pulled into the kernel via scalar-prefetch + manual DMA,
    # but at B*S=16 rows the plain-JAX gather is negligible.
    gx = kparams["proj_emb"][input_ids.T].astype(jnp.float32)       # [S, B, G]
    valid = attention_mask.astype(jnp.float32)                      # [B, S]

    vmem_spec = pl.BlockSpec(memory_space=pltpu.MemorySpace.VMEM)
    out_shape = jax.ShapeDtypeStruct(((S + 1) * B, L), jnp.float32)

    out = pl.pallas_call(
        tagger_kernel,
        out_shape=out_shape,
        in_specs=[vmem_spec] * 5,
        out_specs=vmem_spec,
    )(gx, valid, kparams["wpack"], kparams["w2"], kparams["bpack"])

    tok_logits = jnp.transpose(out[:S * B].reshape(S, B, L), (1, 0, 2))
    cls_logits = out[S * B:]
    return cls_logits, tok_logits


# --------------------------------------------------------------------------
# Plain-JAX reference mirroring the original (unfused, unfolded) module math.
# --------------------------------------------------------------------------
def reference_forward(params, input_ids, attention_mask):
    x = params["emb"][input_ids].astype(jnp.float32)                # [B, S, E]
    valid = attention_mask.astype(jnp.float32)                       # [B, S]
    B, S, _ = x.shape
    hd = params["whh_f"].shape[0]
    H = 2 * hd

    def lstm_step(x_t, v_t, h, c, wih, whh, b):
        gates = _dot(x_t, wih) + _dot(h, whh) + b
        i = jax.nn.sigmoid(gates[:, 0 * hd:1 * hd])
        f = jax.nn.sigmoid(gates[:, 1 * hd:2 * hd])
        g = jnp.tanh(gates[:, 2 * hd:3 * hd])
        o = jax.nn.sigmoid(gates[:, 3 * hd:4 * hd])
        c_new = f * c + i * g
        h_new = o * jnp.tanh(c_new)
        h_keep = v_t * h_new + (1.0 - v_t) * h
        c_keep = v_t * c_new + (1.0 - v_t) * c
        return v_t * h_new, h_keep, c_keep

    zeros = jnp.zeros((B, hd), jnp.float32)
    h, c = zeros, zeros
    fwd = [None] * S
    for t in range(S):
        fwd[t], h, c = lstm_step(x[:, t, :], valid[:, t:t + 1], h, c,
                                 params["wih_f"], params["whh_f"], params["b_f"])
    h_fwd_final = h

    h, c = zeros, zeros
    bwd = [None] * S
    for t in range(S - 1, -1, -1):
        bwd[t], h, c = lstm_step(x[:, t, :], valid[:, t:t + 1], h, c,
                                 params["wih_b"], params["whh_b"], params["b_b"])
    h_bwd_final = h

    src = jnp.concatenate([jnp.stack(fwd, 1), jnp.stack(bwd, 1)], axis=-1)  # [B,S,H]
    # torch.cat((h_n[-1], h_n[-2]), 1) == [backward_final, forward_final]
    # (valid for the 1-layer bidirectional config of this module)
    h_t = jnp.concatenate([h_bwd_final, h_fwd_final], axis=-1)

    src2 = _dot(src.reshape(B * S, H), params["wbr"]) + params["bbr"]

    h1 = jnp.maximum(_dot(h_t, params["wc1"]) + params["bc1"], 0.0)
    cls_logits = _dot(h1, params["wc2"]) + params["bc2"]

    t1 = jnp.maximum(_dot(src2, params["wt1"]) + params["bt1"], 0.0)
    tok_logits = (_dot(t1, params["wt2"]) + params["bt2"]).reshape(B, S, -1)
    return cls_logits, tok_logits


# --------------------------------------------------------------------------
# Deterministic synthetic parameter init (no checkpoint load).
# --------------------------------------------------------------------------
def init_params(key, vocab=50, emb_dim=768, hidden_size=32,
                cls_num_labels=2, tok_num_labels=2):
    hd = hidden_size // 2
    ks = jax.random.split(key, 18)

    def w(k, shape, scale=0.08):
        return jax.random.normal(k, shape, jnp.float32) * scale

    # LSTM biases: PyTorch has b_ih + b_hh; equivalent single combined bias here.
    return dict(
        emb=w(ks[0], (vocab, emb_dim), 0.02),
        wih_f=w(ks[1], (emb_dim, 4 * hd)),
        whh_f=w(ks[2], (hd, 4 * hd)),
        b_f=w(ks[3], (1, 4 * hd)),
        wih_b=w(ks[4], (emb_dim, 4 * hd)),
        whh_b=w(ks[5], (hd, 4 * hd)),
        b_b=w(ks[6], (1, 4 * hd)),
        wbr=w(ks[7], (hidden_size, hidden_size)),
        bbr=w(ks[8], (1, hidden_size)),
        wc1=w(ks[9], (hidden_size, hidden_size)),
        bc1=w(ks[10], (1, hidden_size)),
        wc2=w(ks[11], (hidden_size, cls_num_labels)),
        bc2=w(ks[12], (1, cls_num_labels)),
        wt1=w(ks[13], (hidden_size, hidden_size)),
        bt1=w(ks[14], (1, hidden_size)),
        wt2=w(ks[15], (hidden_size, tok_num_labels)),
        bt2=w(ks[16], (1, tok_num_labels)),
    )


if __name__ == "__main__":
    key = jax.random.PRNGKey(0)
    pkey, ikey = jax.random.split(key)

    VOCAB, EMB, HIDDEN = 50, 768, 32
    B, S = 2, 8

    params = init_params(pkey, vocab=VOCAB, emb_dim=EMB, hidden_size=HIDDEN)
    input_ids = jax.random.randint(ikey, (B, S), 0, VOCAB, dtype=jnp.int32)
    # NOTE: packed-sequence emulation matches PyTorch only for trailing (right) padding.
    attention_mask = jnp.array([[1, 1, 1, 1, 1, 1, 1, 1],
                                [1, 1, 1, 1, 1, 1, 0, 0]], dtype=jnp.float32)

    kparams = prepare_kernel_params(params)
    cls_logits, tok_logits = tagger_forward(params, input_ids, attention_mask,
                                            kparams=kparams)
    jax.block_until_ready((cls_logits, tok_logits))

    assert cls_logits.shape == (B, 2), cls_logits.shape
    assert tok_logits.shape == (B, S, 2), tok_logits.shape

    ref_cls, ref_tok = reference_forward(params, input_ids, attention_mask)
    # bf16 MXU operands (recurrent + head weights) relax the previous 1e-3 bound;
    # the folded f32 input projection keeps the error well under 2e-2.
    assert jnp.allclose(cls_logits, ref_cls, atol=2e-2, rtol=2e-2), (
        jnp.max(jnp.abs(cls_logits - ref_cls)))
    assert jnp.allclose(tok_logits, ref_tok, atol=2e-2, rtol=2e-2), (
        jnp.max(jnp.abs(tok_logits - ref_tok)))

    print("KERNEL_OK")
</pallas_src>

<mosaic_0001>
module attributes {stable_mosaic.version = 11 : i64} {
  func.func @tagger_kernel(%arg0: memref<8x2x128xf32, #tpu.memory_space<vmem>>, %arg1: memref<2x8xf32, #tpu.memory_space<vmem>>, %arg2: memref<32x224xbf16, #tpu.memory_space<vmem>>, %arg3: memref<32x4xbf16, #tpu.memory_space<vmem>>, %arg4: memref<1x68xf32, #tpu.memory_space<vmem>>, %arg5: memref<18x2xf32, #tpu.memory_space<vmem>>) attributes {dimension_semantics = [], scalar_prefetch = 0 : i64, scratch_operands = 0 : i64, tpu.core_type = #tpu.core_type<tc>} {
    %c0 = arith.constant 0 : index
    %c0_0 = arith.constant 0 : index
    %0 = vector.load %arg2[%c0, %c0_0] : memref<32x224xbf16, #tpu.memory_space<vmem>>, vector<32x128xbf16>
    %c0_1 = arith.constant 0 : index
    %c128 = arith.constant 128 : index
    %1 = vector.load %arg2[%c0_1, %c128] : memref<32x224xbf16, #tpu.memory_space<vmem>>, vector<32x32xbf16>
    %c0_2 = arith.constant 0 : index
    %c160 = arith.constant 160 : index
    %2 = vector.load %arg2[%c0_2, %c160] : memref<32x224xbf16, #tpu.memory_space<vmem>>, vector<32x32xbf16>
    %c0_3 = arith.constant 0 : index
    %c192 = arith.constant 192 : index
    %3 = vector.load %arg2[%c0_3, %c192] : memref<32x224xbf16, #tpu.memory_space<vmem>>, vector<32x32xbf16>
    %c0_4 = arith.constant 0 : index
    %c0_5 = arith.constant 0 : index
    %4 = vector.load %arg3[%c0_4, %c0_5] : memref<32x4xbf16, #tpu.memory_space<vmem>>, vector<32x2xbf16>
    %c0_6 = arith.constant 0 : index
    %c2 = arith.constant 2 : index
    %5 = vector.load %arg3[%c0_6, %c2] : memref<32x4xbf16, #tpu.memory_space<vmem>>, vector<32x2xbf16>
    %c0_7 = arith.constant 0 : index
    %c0_8 = arith.constant 0 : index
    %6 = vector.load %arg4[%c0_7, %c0_8] : memref<1x68xf32, #tpu.memory_space<vmem>>, vector<1x32xf32>
    %c0_9 = arith.constant 0 : index
    %c32 = arith.constant 32 : index
    %7 = vector.load %arg4[%c0_9, %c32] : memref<1x68xf32, #tpu.memory_space<vmem>>, vector<1x32xf32>
    %c0_10 = arith.constant 0 : index
    %c64 = arith.constant 64 : index
    %8 = vector.load %arg4[%c0_10, %c64] : memref<1x68xf32, #tpu.memory_space<vmem>>, vector<1x2xf32>
    %c0_11 = arith.constant 0 : index
    %c66 = arith.constant 66 : index
    %9 = vector.load %arg4[%c0_11, %c66] : memref<1x68xf32, #tpu.memory_space<vmem>>, vector<1x2xf32>
    %10 = tpu.iota {dimensions = array<i32: 1>} : vector<1x32xi32>
    %11 = tpu.concatenate %10, %10, %10, %10 in 1 : vector<1x32xi32>, vector<1x32xi32>, vector<1x32xi32>, vector<1x32xi32> -> vector<1x128xi32>
    %c16_i32 = arith.constant 16 : i32
    %12 = vector.broadcast %c16_i32 : i32 to vector<1x32xi32>
    %13 = arith.cmpi slt, %10, %12 : vector<1x32xi32>
    %c16_i32_12 = arith.constant 16 : i32
    %14 = vector.broadcast %c16_i32_12 : i32 to vector<1x128xi32>
    %15 = arith.cmpi slt, %11, %14 : vector<1x128xi32>
    %cst = arith.constant 0.000000e+00 : f32
    %16 = vector.broadcast %cst : f32 to vector<2x32xf32>
    %cst_13 = arith.constant 0.000000e+00 : f32
    %17 = vector.broadcast %cst_13 : f32 to vector<2x32xf32>
    %c0_14 = arith.constant 0 : index
    %c0_15 = arith.constant 0 : index
    %c0_16 = arith.constant 0 : index
    %18 = vector.load %arg0[%c0_14, %c0_15, %c0_16] : memref<8x2x128xf32, #tpu.memory_space<vmem>>, vector<1x2x128xf32>
    %19 = vector.shape_cast %18 : vector<1x2x128xf32> to vector<2x128xf32>
    %c7 = arith.constant 7 : index
    %c0_17 = arith.constant 0 : index
    %c0_18 = arith.constant 0 : index
    %20 = vector.load %arg0[%c7, %c0_17, %c0_18] : memref<8x2x128xf32, #tpu.memory_space<vmem>>, vector<1x2x128xf32>
    %21 = vector.shape_cast %20 : vector<1x2x128xf32> to vector<2x128xf32>
    %22 = vector.shape_cast %15 : vector<1x128xi1> to vector<1x128xi1>
    %23 = vector.broadcast %22 : vector<1x128xi1> to vector<2x128xi1>
    %24 = arith.select %23, %19, %21 : vector<2x128xi1>, vector<2x128xf32>
    %25 = arith.truncf %16 : vector<2x32xf32> to vector<2x32xbf16>
    %cst_19 = arith.constant dense<0.000000e+00> : vector<2x128xf32>
    %26 = tpu.matmul %25, %0, %cst_19 {dimension_numbers = #tpu.dot_dimension_numbers<[1], [0], [0], [1], [0, 0, 1, 1], [], []>} : vector<2x32xbf16>, vector<32x128xbf16>, vector<2x128xf32> -> vector<2x128xf32>
    %27 = arith.addf %24, %26 : vector<2x128xf32>
    %28 = arith.negf %27 : vector<2x128xf32>
    %29 = math.exp %28 : vector<2x128xf32>
    %cst_20 = arith.constant 1.000000e+00 : f32
    %30 = vector.broadcast %cst_20 : f32 to vector<2x128xf32>
    %31 = arith.addf %30, %29 : vector<2x128xf32>
    %32 = arith.divf %30, %31 : vector<2x128xf32>
    %33 = math.tanh %27 : vector<2x128xf32>
    %34 = vector.extract_strided_slice %32 {offsets = [0, 0], sizes = [2, 32], strides = [1, 1]} : vector<2x128xf32> to vector<2x32xf32>
    %35 = vector.extract_strided_slice %32 {offsets = [0, 32], sizes = [2, 32], strides = [1, 1]} : vector<2x128xf32> to vector<2x32xf32>
    %36 = vector.extract_strided_slice %33 {offsets = [0, 64], sizes = [2, 32], strides = [1, 1]} : vector<2x128xf32> to vector<2x32xf32>
    %37 = vector.extract_strided_slice %32 {offsets = [0, 96], sizes = [2, 32], strides = [1, 1]} : vector<2x128xf32> to vector<2x32xf32>
    %38 = arith.mulf %35, %17 : vector<2x32xf32>
    %39 = arith.mulf %34, %36 : vector<2x32xf32>
    %40 = arith.addf %38, %39 : vector<2x32xf32>
    %41 = math.tanh %40 : vector<2x32xf32>
    %42 = arith.mulf %37, %41 : vector<2x32xf32>
    %c0_21 = arith.constant 0 : index
    %c0_22 = arith.constant 0 : index
    %43 = vector.load %arg1[%c0_21, %c0_22] : memref<2x8xf32, #tpu.memory_space<vmem>>, vector<2x1xf32>
    %c0_23 = arith.constant 0 : index
    %c7_24 = arith.constant 7 : index
    %44 = vector.load %arg1[%c0_23, %c7_24] : memref<2x8xf32, #tpu.memory_space<vmem>>, vector<2x1xf32>
    %45 = vector.shape_cast %13 : vector<1x32xi1> to vector<1x32xi1>
    %46 = vector.broadcast %45 : vector<1x32xi1> to vector<2x32xi1>
    %47 = vector.shape_cast %43 : vector<2x1xf32> to vector<2x1xf32>
    %48 = vector.broadcast %47 : vector<2x1xf32> to vector<2x32xf32>
    %49 = vector.shape_cast %44 : vector<2x1xf32> to vector<2x1xf32>
    %50 = vector.broadcast %49 : vector<2x1xf32> to vector<2x32xf32>
    %51 = arith.select %46, %48, %50 : vector<2x32xi1>, vector<2x32xf32>
    %cst_25 = arith.constant 5.000000e-01 : f32
    %52 = vector.broadcast %cst_25 : f32 to vector<2x32xf32>
    %53 = arith.cmpf ogt, %51, %52 : vector<2x32xf32>
    %54 = arith.select %53, %42, %16 : vector<2x32xi1>, vector<2x32xf32>
    %55 = arith.select %53, %40, %17 : vector<2x32xi1>, vector<2x32xf32>
    %56 = arith.mulf %51, %42 : vector<2x32xf32>
    %c1 = arith.constant 1 : index
    %c0_26 = arith.constant 0 : index
    %c0_27 = arith.constant 0 : index
    %57 = vector.load %arg0[%c1, %c0_26, %c0_27] : memref<8x2x128xf32, #tpu.memory_space<vmem>>, vector<1x2x128xf32>
    %58 = vector.shape_cast %57 : vector<1x2x128xf32> to vector<2x128xf32>
    %c6 = arith.constant 6 : index
    %c0_28 = arith.constant 0 : index
    %c0_29 = arith.constant 0 : index
    %59 = vector.load %arg0[%c6, %c0_28, %c0_29] : memref<8x2x128xf32, #tpu.memory_space<vmem>>, vector<1x2x128xf32>
    %60 = vector.shape_cast %59 : vector<1x2x128xf32> to vector<2x128xf32>
    %61 = vector.shape_cast %15 : vector<1x128xi1> to vector<1x128xi1>
    %62 = vector.broadcast %61 : vector<1x128xi1> to vector<2x128xi1>
    %63 = arith.select %62, %58, %60 : vector<2x128xi1>, vector<2x128xf32>
    %64 = arith.truncf %54 : vector<2x32xf32> to vector<2x32xbf16>
    %cst_30 = arith.constant dense<0.000000e+00> : vector<2x128xf32>
    %65 = tpu.matmul %64, %0, %cst_30 {dimension_numbers = #tpu.dot_dimension_numbers<[1], [0], [0], [1], [0, 0, 1, 1], [], []>} : vector<2x32xbf16>, vector<32x128xbf16>, vector<2x128xf32> -> vector<2x128xf32>
    %66 = arith.addf %63, %65 : vector<2x128xf32>
    %67 = arith.negf %66 : vector<2x128xf32>
    %68 = math.exp %67 : vector<2x128xf32>
    %cst_31 = arith.constant 1.000000e+00 : f32
    %69 = vector.broadcast %cst_31 : f32 to vector<2x128xf32>
    %70 = arith.addf %69, %68 : vector<2x128xf32>
    %71 = arith.divf %69, %70 : vector<2x128xf32>
    %72 = math.tanh %66 : vector<2x128xf32>
    %73 = vector.extract_strided_slice %71 {offsets = [0, 0], sizes = [2, 32], strides = [1, 1]} : vector<2x128xf32> to vector<2x32xf32>
    %74 = vector.extract_strided_slice %71 {offsets = [0, 32], sizes = [2, 32], strides = [1, 1]} : vector<2x128xf32> to vector<2x32xf32>
    %75 = vector.extract_strided_slice %72 {offsets = [0, 64], sizes = [2, 32], strides = [1, 1]} : vector<2x128xf32> to vector<2x32xf32>
    %76 = vector.extract_strided_slice %71 {offsets = [0, 96], sizes = [2, 32], strides = [1, 1]} : vector<2x128xf32> to vector<2x32xf32>
    %77 = arith.mulf %74, %55 : vector<2x32xf32>
    %78 = arith.mulf %73, %75 : vector<2x32xf32>
    %79 = arith.addf %77, %78 : vector<2x32xf32>
    %80 = math.tanh %79 : vector<2x32xf32>
    %81 = arith.mulf %76, %80 : vector<2x32xf32>
    %c0_32 = arith.constant 0 : index
    %c1_33 = arith.constant 1 : index
    %82 = vector.load %arg1[%c0_32, %c1_33] : memref<2x8xf32, #tpu.memory_space<vmem>>, vector<2x1xf32>
    %c0_34 = arith.constant 0 : index
    %c6_35 = arith.constant 6 : index
    %83 = vector.load %arg1[%c0_34, %c6_35] : memref<2x8xf32, #tpu.memory_space<vmem>>, vector<2x1xf32>
    %84 = vector.shape_cast %13 : vector<1x32xi1> to vector<1x32xi1>
    %85 = vector.broadcast %84 : vector<1x32xi1> to vector<2x32xi1>
    %86 = vector.shape_cast %82 : vector<2x1xf32> to vector<2x1xf32>
    %87 = vector.broadcast %86 : vector<2x1xf32> to vector<2x32xf32>
    %88 = vector.shape_cast %83 : vector<2x1xf32> to vector<2x1xf32>
    %89 = vector.broadcast %88 : vector<2x1xf32> to vector<2x32xf32>
    %90 = arith.select %85, %87, %89 : vector<2x32xi1>, vector<2x32xf32>
    %cst_36 = arith.constant 5.000000e-01 : f32
    %91 = vector.broadcast %cst_36 : f32 to vector<2x32xf32>
    %92 = arith.cmpf ogt, %90, %91 : vector<2x32xf32>
    %93 = arith.select %92, %81, %54 : vector<2x32xi1>, vector<2x32xf32>
    %94 = arith.select %92, %79, %55 : vector<2x32xi1>, vector<2x32xf32>
    %95 = arith.mulf %90, %81 : vector<2x32xf32>
    %c2_37 = arith.constant 2 : index
    %c0_38 = arith.constant 0 : index
    %c0_39 = arith.constant 0 : index
    %96 = vector.load %arg0[%c2_37, %c0_38, %c0_39] : memref<8x2x128xf32, #tpu.memory_space<vmem>>, vector<1x2x128xf32>
    %97 = vector.shape_cast %96 : vector<1x2x128xf32> to vector<2x128xf32>
    %c5 = arith.constant 5 : index
    %c0_40 = arith.constant 0 : index
    %c0_41 = arith.constant 0 : index
    %98 = vector.load %arg0[%c5, %c0_40, %c0_41] : memref<8x2x128xf32, #tpu.memory_space<vmem>>, vector<1x2x128xf32>
    %99 = vector.shape_cast %98 : vector<1x2x128xf32> to vector<2x128xf32>
    %100 = vector.shape_cast %15 : vector<1x128xi1> to vector<1x128xi1>
    %101 = vector.broadcast %100 : vector<1x128xi1> to vector<2x128xi1>
    %102 = arith.select %101, %97, %99 : vector<2x128xi1>, vector<2x128xf32>
    %103 = arith.truncf %93 : vector<2x32xf32> to vector<2x32xbf16>
    %cst_42 = arith.constant dense<0.000000e+00> : vector<2x128xf32>
    %104 = tpu.matmul %103, %0, %cst_42 {dimension_numbers = #tpu.dot_dimension_numbers<[1], [0], [0], [1], [0, 0, 1, 1], [], []>} : vector<2x32xbf16>, vector<32x128xbf16>, vector<2x128xf32> -> vector<2x128xf32>
    %105 = arith.addf %102, %104 : vector<2x128xf32>
    %106 = arith.negf %105 : vector<2x128xf32>
    %107 = math.exp %106 : vector<2x128xf32>
    %cst_43 = arith.constant 1.000000e+00 : f32
    %108 = vector.broadcast %cst_43 : f32 to vector<2x128xf32>
    %109 = arith.addf %108, %107 : vector<2x128xf32>
    %110 = arith.divf %108, %109 : vector<2x128xf32>
    %111 = math.tanh %105 : vector<2x128xf32>
    %112 = vector.extract_strided_slice %110 {offsets = [0, 0], sizes = [2, 32], strides = [1, 1]} : vector<2x128xf32> to vector<2x32xf32>
    %113 = vector.extract_strided_slice %110 {offsets = [0, 32], sizes = [2, 32], strides = [1, 1]} : vector<2x128xf32> to vector<2x32xf32>
    %114 = vector.extract_strided_slice %111 {offsets = [0, 64], sizes = [2, 32], strides = [1, 1]} : vector<2x128xf32> to vector<2x32xf32>
    %115 = vector.extract_strided_slice %110 {offsets = [0, 96], sizes = [2, 32], strides = [1, 1]} : vector<2x128xf32> to vector<2x32xf32>
    %116 = arith.mulf %113, %94 : vector<2x32xf32>
    %117 = arith.mulf %112, %114 : vector<2x32xf32>
    %118 = arith.addf %116, %117 : vector<2x32xf32>
    %119 = math.tanh %118 : vector<2x32xf32>
    %120 = arith.mulf %115, %119 : vector<2x32xf32>
    %c0_44 = arith.constant 0 : index
    %c2_45 = arith.constant 2 : index
    %121 = vector.load %arg1[%c0_44, %c2_45] : memref<2x8xf32, #tpu.memory_space<vmem>>, vector<2x1xf32>
    %c0_46 = arith.constant 0 : index
    %c5_47 = arith.constant 5 : index
    %122 = vector.load %arg1[%c0_46, %c5_47] : memref<2x8xf32, #tpu.memory_space<vmem>>, vector<2x1xf32>
    %123 = vector.shape_cast %13 : vector<1x32xi1> to vector<1x32xi1>
    %124 = vector.broadcast %123 : vector<1x32xi1> to vector<2x32xi1>
    %125 = vector.shape_cast %121 : vector<2x1xf32> to vector<2x1xf32>
    %126 = vector.broadcast %125 : vector<2x1xf32> to vector<2x32xf32>
    %127 = vector.shape_cast %122 : vector<2x1xf32> to vector<2x1xf32>
    %128 = vector.broadcast %127 : vector<2x1xf32> to vector<2x32xf32>
    %129 = arith.select %124, %126, %128 : vector<2x32xi1>, vector<2x32xf32>
    %cst_48 = arith.constant 5.000000e-01 : f32
    %130 = vector.broadcast %cst_48 : f32 to vector<2x32xf32>
    %131 = arith.cmpf ogt, %129, %130 : vector<2x32xf32>
    %132 = arith.select %131, %120, %93 : vector<2x32xi1>, vector<2x32xf32>
    %133 = arith.select %131, %118, %94 : vector<2x32xi1>, vector<2x32xf32>
    %134 = arith.mulf %129, %120 : vector<2x32xf32>
    %c3 = arith.constant 3 : index
    %c0_49 = arith.constant 0 : index
    %c0_50 = arith.constant 0 : index
    %135 = vector.load %arg0[%c3, %c0_49, %c0_50] : memref<8x2x128xf32, #tpu.memory_space<vmem>>, vector<1x2x128xf32>
    %136 = vector.shape_cast %135 : vector<1x2x128xf32> to vector<2x128xf32>
    %c4 = arith.constant 4 : index
    %c0_51 = arith.constant 0 : index
    %c0_52 = arith.constant 0 : index
    %137 = vector.load %arg0[%c4, %c0_51, %c0_52] : memref<8x2x128xf32, #tpu.memory_space<vmem>>, vector<1x2x128xf32>
    %138 = vector.shape_cast %137 : vector<1x2x128xf32> to vector<2x128xf32>
    %139 = vector.shape_cast %15 : vector<1x128xi1> to vector<1x128xi1>
    %140 = vector.broadcast %139 : vector<1x128xi1> to vector<2x128xi1>
    %141 = arith.select %140, %136, %138 : vector<2x128xi1>, vector<2x128xf32>
    %142 = arith.truncf %132 : vector<2x32xf32> to vector<2x32xbf16>
    %cst_53 = arith.constant dense<0.000000e+00> : vector<2x128xf32>
    %143 = tpu.matmul %142, %0, %cst_53 {dimension_numbers = #tpu.dot_dimension_numbers<[1], [0], [0], [1], [0, 0, 1, 1], [], []>} : vector<2x32xbf16>, vector<32x128xbf16>, vector<2x128xf32> -> vector<2x128xf32>
    %144 = arith.addf %141, %143 : vector<2x128xf32>
    %145 = arith.negf %144 : vector<2x128xf32>
    %146 = math.exp %145 : vector<2x128xf32>
    %cst_54 = arith.constant 1.000000e+00 : f32
    %147 = vector.broadcast %cst_54 : f32 to vector<2x128xf32>
    %148 = arith.addf %147, %146 : vector<2x128xf32>
    %149 = arith.divf %147, %148 : vector<2x128xf32>
    %150 = math.tanh %144 : vector<2x128xf32>
    %151 = vector.extract_strided_slice %149 {offsets = [0, 0], sizes = [2, 32], strides = [1, 1]} : vector<2x128xf32> to vector<2x32xf32>
    %152 = vector.extract_strided_slice %149 {offsets = [0, 32], sizes = [2, 32], strides = [1, 1]} : vector<2x128xf32> to vector<2x32xf32>
    %153 = vector.extract_strided_slice %150 {offsets = [0, 64], sizes = [2, 32], strides = [1, 1]} : vector<2x128xf32> to vector<2x32xf32>
    %154 = vector.extract_strided_slice %149 {offsets = [0, 96], sizes = [2, 32], strides = [1, 1]} : vector<2x128xf32> to vector<2x32xf32>
    %155 = arith.mulf %152, %133 : vector<2x32xf32>
    %156 = arith.mulf %151, %153 : vector<2x32xf32>
    %157 = arith.addf %155, %156 : vector<2x32xf32>
    %158 = math.tanh %157 : vector<2x32xf32>
    %159 = arith.mulf %154, %158 : vector<2x32xf32>
    %c0_55 = arith.constant 0 : index
    %c3_56 = arith.constant 3 : index
    %160 = vector.load %arg1[%c0_55, %c3_56] : memref<2x8xf32, #tpu.memory_space<vmem>>, vector<2x1xf32>
    %c0_57 = arith.constant 0 : index
    %c4_58 = arith.constant 4 : index
    %161 = vector.load %arg1[%c0_57, %c4_58] : memref<2x8xf32, #tpu.memory_space<vmem>>, vector<2x1xf32>
    %162 = vector.shape_cast %13 : vector<1x32xi1> to vector<1x32xi1>
    %163 = vector.broadcast %162 : vector<1x32xi1> to vector<2x32xi1>
    %164 = vector.shape_cast %160 : vector<2x1xf32> to vector<2x1xf32>
    %165 = vector.broadcast %164 : vector<2x1xf32> to vector<2x32xf32>
    %166 = vector.shape_cast %161 : vector<2x1xf32> to vector<2x1xf32>
    %167 = vector.broadcast %166 : vector<2x1xf32> to vector<2x32xf32>
    %168 = arith.select %163, %165, %167 : vector<2x32xi1>, vector<2x32xf32>
    %cst_59 = arith.constant 5.000000e-01 : f32
    %169 = vector.broadcast %cst_59 : f32 to vector<2x32xf32>
    %170 = arith.cmpf ogt, %168, %169 : vector<2x32xf32>
    %171 = arith.select %170, %159, %132 : vector<2x32xi1>, vector<2x32xf32>
    %172 = arith.select %170, %157, %133 : vector<2x32xi1>, vector<2x32xf32>
    %173 = arith.mulf %168, %159 : vector<2x32xf32>
    %c4_60 = arith.constant 4 : index
    %c0_61 = arith.constant 0 : index
    %c0_62 = arith.constant 0 : index
    %174 = vector.load %arg0[%c4_60, %c0_61, %c0_62] : memref<8x2x128xf32, #tpu.memory_space<vmem>>, vector<1x2x128xf32>
    %175 = vector.shape_cast %174 : vector<1x2x128xf32> to vector<2x128xf32>
    %c3_63 = arith.constant 3 : index
    %c0_64 = arith.constant 0 : index
    %c0_65 = arith.constant 0 : index
    %176 = vector.load %arg0[%c3_63, %c0_64, %c0_65] : memref<8x2x128xf32, #tpu.memory_space<vmem>>, vector<1x2x128xf32>
    %177 = vector.shape_cast %176 : vector<1x2x128xf32> to vector<2x128xf32>
    %178 = vector.shape_cast %15 : vector<1x128xi1> to vector<1x128xi1>
    %179 = vector.broadcast %178 : vector<1x128xi1> to vector<2x128xi1>
    %180 = arith.select %179, %175, %177 : vector<2x128xi1>, vector<2x128xf32>
    %181 = arith.truncf %171 : vector<2x32xf32> to vector<2x32xbf16>
    %cst_66 = arith.constant dense<0.000000e+00> : vector<2x128xf32>
    %182 = tpu.matmul %181, %0, %cst_66 {dimension_numbers = #tpu.dot_dimension_numbers<[1], [0], [0], [1], [0, 0, 1, 1], [], []>} : vector<2x32xbf16>, vector<32x128xbf16>, vector<2x128xf32> -> vector<2x128xf32>
    %183 = arith.addf %180, %182 : vector<2x128xf32>
    %184 = arith.negf %183 : vector<2x128xf32>
    %185 = math.exp %184 : vector<2x128xf32>
    %cst_67 = arith.constant 1.000000e+00 : f32
    %186 = vector.broadcast %cst_67 : f32 to vector<2x128xf32>
    %187 = arith.addf %186, %185 : vector<2x128xf32>
    %188 = arith.divf %186, %187 : vector<2x128xf32>
    %189 = math.tanh %183 : vector<2x128xf32>
    %190 = vector.extract_strided_slice %188 {offsets = [0, 0], sizes = [2, 32], strides = [1, 1]} : vector<2x128xf32> to vector<2x32xf32>
    %191 = vector.extract_strided_slice %188 {offsets = [0, 32], sizes = [2, 32], strides = [1, 1]} : vector<2x128xf32> to vector<2x32xf32>
    %192 = vector.extract_strided_slice %189 {offsets = [0, 64], sizes = [2, 32], strides = [1, 1]} : vector<2x128xf32> to vector<2x32xf32>
    %193 = vector.extract_strided_slice %188 {offsets = [0, 96], sizes = [2, 32], strides = [1, 1]} : vector<2x128xf32> to vector<2x32xf32>
    %194 = arith.mulf %191, %172 : vector<2x32xf32>
    %195 = arith.mulf %190, %192 : vector<2x32xf32>
    %196 = arith.addf %194, %195 : vector<2x32xf32>
    %197 = math.tanh %196 : vector<2x32xf32>
    %198 = arith.mulf %193, %197 : vector<2x32xf32>
    %c0_68 = arith.constant 0 : index
    %c4_69 = arith.constant 4 : index
    %199 = vector.load %arg1[%c0_68, %c4_69] : memref<2x8xf32, #tpu.memory_space<vmem>>, vector<2x1xf32>
    %c0_70 = arith.constant 0 : index
    %c3_71 = arith.constant 3 : index
    %200 = vector.load %arg1[%c0_70, %c3_71] : memref<2x8xf32, #tpu.memory_space<vmem>>, vector<2x1xf32>
    %201 = vector.shape_cast %13 : vector<1x32xi1> to vector<1x32xi1>
    %202 = vector.broadcast %201 : vector<1x32xi1> to vector<2x32xi1>
    %203 = vector.shape_cast %199 : vector<2x1xf32> to vector<2x1xf32>
    %204 = vector.broadcast %203 : vector<2x1xf32> to vector<2x32xf32>
    %205 = vector.shape_cast %200 : vector<2x1xf32> to vector<2x1xf32>
    %206 = vector.broadcast %205 : vector<2x1xf32> to vector<2x32xf32>
    %207 = arith.select %202, %204, %206 : vector<2x32xi1>, vector<2x32xf32>
    %cst_72 = arith.constant 5.000000e-01 : f32
    %208 = vector.broadcast %cst_72 : f32 to vector<2x32xf32>
    %209 = arith.cmpf ogt, %207, %208 : vector<2x32xf32>
    %210 = arith.select %209, %198, %171 : vector<2x32xi1>, vector<2x32xf32>
    %211 = arith.select %209, %196, %172 : vector<2x32xi1>, vector<2x32xf32>
    %212 = arith.mulf %207, %198 : vector<2x32xf32>
    %c5_73 = arith.constant 5 : index
    %c0_74 = arith.constant 0 : index
    %c0_75 = arith.constant 0 : index
    %213 = vector.load %arg0[%c5_73, %c0_74, %c0_75] : memref<8x2x128xf32, #tpu.memory_space<vmem>>, vector<1x2x128xf32>
    %214 = vector.shape_cast %213 : vector<1x2x128xf32> to vector<2x128xf32>
    %c2_76 = arith.constant 2 : index
    %c0_77 = arith.constant 0 : index
    %c0_78 = arith.constant 0 : index
    %215 = vector.load %arg0[%c2_76, %c0_77, %c0_78] : memref<8x2x128xf32, #tpu.memory_space<vmem>>, vector<1x2x128xf32>
    %216 = vector.shape_cast %215 : vector<1x2x128xf32> to vector<2x128xf32>
    %217 = vector.shape_cast %15 : vector<1x128xi1> to vector<1x128xi1>
    %218 = vector.broadcast %217 : vector<1x128xi1> to vector<2x128xi1>
    %219 = arith.select %218, %214, %216 : vector<2x128xi1>, vector<2x128xf32>
    %220 = arith.truncf %210 : vector<2x32xf32> to vector<2x32xbf16>
    %cst_79 = arith.constant dense<0.000000e+00> : vector<2x128xf32>
    %221 = tpu.matmul %220, %0, %cst_79 {dimension_numbers = #tpu.dot_dimension_numbers<[1], [0], [0], [1], [0, 0, 1, 1], [], []>} : vector<2x32xbf16>, vector<32x128xbf16>, vector<2x128xf32> -> vector<2x128xf32>
    %222 = arith.addf %219, %221 : vector<2x128xf32>
    %223 = arith.negf %222 : vector<2x128xf32>
    %224 = math.exp %223 : vector<2x128xf32>
    %cst_80 = arith.constant 1.000000e+00 : f32
    %225 = vector.broadcast %cst_80 : f32 to vector<2x128xf32>
    %226 = arith.addf %225, %224 : vector<2x128xf32>
    %227 = arith.divf %225, %226 : vector<2x128xf32>
    %228 = math.tanh %222 : vector<2x128xf32>
    %229 = vector.extract_strided_slice %227 {offsets = [0, 0], sizes = [2, 32], strides = [1, 1]} : vector<2x128xf32> to vector<2x32xf32>
    %230 = vector.extract_strided_slice %227 {offsets = [0, 32], sizes = [2, 32], strides = [1, 1]} : vector<2x128xf32> to vector<2x32xf32>
    %231 = vector.extract_strided_slice %228 {offsets = [0, 64], sizes = [2, 32], strides = [1, 1]} : vector<2x128xf32> to vector<2x32xf32>
    %232 = vector.extract_strided_slice %227 {offsets = [0, 96], sizes = [2, 32], strides = [1, 1]} : vector<2x128xf32> to vector<2x32xf32>
    %233 = arith.mulf %230, %211 : vector<2x32xf32>
    %234 = arith.mulf %229, %231 : vector<2x32xf32>
    %235 = arith.addf %233, %234 : vector<2x32xf32>
    %236 = math.tanh %235 : vector<2x32xf32>
    %237 = arith.mulf %232, %236 : vector<2x32xf32>
    %c0_81 = arith.constant 0 : index
    %c5_82 = arith.constant 5 : index
    %238 = vector.load %arg1[%c0_81, %c5_82] : memref<2x8xf32, #tpu.memory_space<vmem>>, vector<2x1xf32>
    %c0_83 = arith.constant 0 : index
    %c2_84 = arith.constant 2 : index
    %239 = vector.load %arg1[%c0_83, %c2_84] : memref<2x8xf32, #tpu.memory_space<vmem>>, vector<2x1xf32>
    %240 = vector.shape_cast %13 : vector<1x32xi1> to vector<1x32xi1>
    %241 = vector.broadcast %240 : vector<1x32xi1> to vector<2x32xi1>
    %242 = vector.shape_cast %238 : vector<2x1xf32> to vector<2x1xf32>
    %243 = vector.broadcast %242 : vector<2x1xf32> to vector<2x32xf32>
    %244 = vector.shape_cast %239 : vector<2x1xf32> to vector<2x1xf32>
    %245 = vector.broadcast %244 : vector<2x1xf32> to vector<2x32xf32>
    %246 = arith.select %241, %243, %245 : vector<2x32xi1>, vector<2x32xf32>
    %cst_85 = arith.constant 5.000000e-01 : f32
    %247 = vector.broadcast %cst_85 : f32 to vector<2x32xf32>
    %248 = arith.cmpf ogt, %246, %247 : vector<2x32xf32>
    %249 = arith.select %248, %237, %210 : vector<2x32xi1>, vector<2x32xf32>
    %250 = arith.select %248, %235, %211 : vector<2x32xi1>, vector<2x32xf32>
    %251 = arith.mulf %246, %237 : vector<2x32xf32>
    %c6_86 = arith.constant 6 : index
    %c0_87 = arith.constant 0 : index
    %c0_88 = arith.constant 0 : index
    %252 = vector.load %arg0[%c6_86, %c0_87, %c0_88] : memref<8x2x128xf32, #tpu.memory_space<vmem>>, vector<1x2x128xf32>
    %253 = vector.shape_cast %252 : vector<1x2x128xf32> to vector<2x128xf32>
    %c1_89 = arith.constant 1 : index
    %c0_90 = arith.constant 0 : index
    %c0_91 = arith.constant 0 : index
    %254 = vector.load %arg0[%c1_89, %c0_90, %c0_91] : memref<8x2x128xf32, #tpu.memory_space<vmem>>, vector<1x2x128xf32>
    %255 = vector.shape_cast %254 : vector<1x2x128xf32> to vector<2x128xf32>
    %256 = vector.shape_cast %15 : vector<1x128xi1> to vector<1x128xi1>
    %257 = vector.broadcast %256 : vector<1x128xi1> to vector<2x128xi1>
    %258 = arith.select %257, %253, %255 : vector<2x128xi1>, vector<2x128xf32>
    %259 = arith.truncf %249 : vector<2x32xf32> to vector<2x32xbf16>
    %cst_92 = arith.constant dense<0.000000e+00> : vector<2x128xf32>
    %260 = tpu.matmul %259, %0, %cst_92 {dimension_numbers = #tpu.dot_dimension_numbers<[1], [0], [0], [1], [0, 0, 1, 1], [], []>} : vector<2x32xbf16>, vector<32x128xbf16>, vector<2x128xf32> -> vector<2x128xf32>
    %261 = arith.addf %258, %260 : vector<2x128xf32>
    %262 = arith.negf %261 : vector<2x128xf32>
    %263 = math.exp %262 : vector<2x128xf32>
    %cst_93 = arith.constant 1.000000e+00 : f32
    %264 = vector.broadcast %cst_93 : f32 to vector<2x128xf32>
    %265 = arith.addf %264, %263 : vector<2x128xf32>
    %266 = arith.divf %264, %265 : vector<2x128xf32>
    %267 = math.tanh %261 : vector<2x128xf32>
    %268 = vector.extract_strided_slice %266 {offsets = [0, 0], sizes = [2, 32], strides = [1, 1]} : vector<2x128xf32> to vector<2x32xf32>
    %269 = vector.extract_strided_slice %266 {offsets = [0, 32], sizes = [2, 32], strides = [1, 1]} : vector<2x128xf32> to vector<2x32xf32>
    %270 = vector.extract_strided_slice %267 {offsets = [0, 64], sizes = [2, 32], strides = [1, 1]} : vector<2x128xf32> to vector<2x32xf32>
    %271 = vector.extract_strided_slice %266 {offsets = [0, 96], sizes = [2, 32], strides = [1, 1]} : vector<2x128xf32> to vector<2x32xf32>
    %272 = arith.mulf %269, %250 : vector<2x32xf32>
    %273 = arith.mulf %268, %270 : vector<2x32xf32>
    %274 = arith.addf %272, %273 : vector<2x32xf32>
    %275 = math.tanh %274 : vector<2x32xf32>
    %276 = arith.mulf %271, %275 : vector<2x32xf32>
    %c0_94 = arith.constant 0 : index
    %c6_95 = arith.constant 6 : index
    %277 = vector.load %arg1[%c0_94, %c6_95] : memref<2x8xf32, #tpu.memory_space<vmem>>, vector<2x1xf32>
    %c0_96 = arith.constant 0 : index
    %c1_97 = arith.constant 1 : index
    %278 = vector.load %arg1[%c0_96, %c1_97] : memref<2x8xf32, #tpu.memory_space<vmem>>, vector<2x1xf32>
    %279 = vector.shape_cast %13 : vector<1x32xi1> to vector<1x32xi1>
    %280 = vector.broadcast %279 : vector<1x32xi1> to vector<2x32xi1>
    %281 = vector.shape_cast %277 : vector<2x1xf32> to vector<2x1xf32>
    %282 = vector.broadcast %281 : vector<2x1xf32> to vector<2x32xf32>
    %283 = vector.shape_cast %278 : vector<2x1xf32> to vector<2x1xf32>
    %284 = vector.broadcast %283 : vector<2x1xf32> to vector<2x32xf32>
    %285 = arith.select %280, %282, %284 : vector<2x32xi1>, vector<2x32xf32>
    %cst_98 = arith.constant 5.000000e-01 : f32
    %286 = vector.broadcast %cst_98 : f32 to vector<2x32xf32>
    %287 = arith.cmpf ogt, %285, %286 : vector<2x32xf32>
    %288 = arith.select %287, %276, %249 : vector<2x32xi1>, vector<2x32xf32>
    %289 = arith.select %287, %274, %250 : vector<2x32xi1>, vector<2x32xf32>
    %290 = arith.mulf %285, %276 : vector<2x32xf32>
    %c7_99 = arith.constant 7 : index
    %c0_100 = arith.constant 0 : index
    %c0_101 = arith.constant 0 : index
    %291 = vector.load %arg0[%c7_99, %c0_100, %c0_101] : memref<8x2x128xf32, #tpu.memory_space<vmem>>, vector<1x2x128xf32>
    %292 = vector.shape_cast %291 : vector<1x2x128xf32> to vector<2x128xf32>
    %c0_102 = arith.constant 0 : index
    %c0_103 = arith.constant 0 : index
    %c0_104 = arith.constant 0 : index
    %293 = vector.load %arg0[%c0_102, %c0_103, %c0_104] : memref<8x2x128xf32, #tpu.memory_space<vmem>>, vector<1x2x128xf32>
    %294 = vector.shape_cast %293 : vector<1x2x128xf32> to vector<2x128xf32>
    %295 = vector.shape_cast %15 : vector<1x128xi1> to vector<1x128xi1>
    %296 = vector.broadcast %295 : vector<1x128xi1> to vector<2x128xi1>
    %297 = arith.select %296, %292, %294 : vector<2x128xi1>, vector<2x128xf32>
    %298 = arith.truncf %288 : vector<2x32xf32> to vector<2x32xbf16>
    %cst_105 = arith.constant dense<0.000000e+00> : vector<2x128xf32>
    %299 = tpu.matmul %298, %0, %cst_105 {dimension_numbers = #tpu.dot_dimension_numbers<[1], [0], [0], [1], [0, 0, 1, 1], [], []>} : vector<2x32xbf16>, vector<32x128xbf16>, vector<2x128xf32> -> vector<2x128xf32>
    %300 = arith.addf %297, %299 : vector<2x128xf32>
    %301 = arith.negf %300 : vector<2x128xf32>
    %302 = math.exp %301 : vector<2x128xf32>
    %cst_106 = arith.constant 1.000000e+00 : f32
    %303 = vector.broadcast %cst_106 : f32 to vector<2x128xf32>
    %304 = arith.addf %303, %302 : vector<2x128xf32>
    %305 = arith.divf %303, %304 : vector<2x128xf32>
    %306 = math.tanh %300 : vector<2x128xf32>
    %307 = vector.extract_strided_slice %305 {offsets = [0, 0], sizes = [2, 32], strides = [1, 1]} : vector<2x128xf32> to vector<2x32xf32>
    %308 = vector.extract_strided_slice %305 {offsets = [0, 32], sizes = [2, 32], strides = [1, 1]} : vector<2x128xf32> to vector<2x32xf32>
    %309 = vector.extract_strided_slice %306 {offsets = [0, 64], sizes = [2, 32], strides = [1, 1]} : vector<2x128xf32> to vector<2x32xf32>
    %310 = vector.extract_strided_slice %305 {offsets = [0, 96], sizes = [2, 32], strides = [1, 1]} : vector<2x128xf32> to vector<2x32xf32>
    %311 = arith.mulf %308, %289 : vector<2x32xf32>
    %312 = arith.mulf %307, %309 : vector<2x32xf32>
    %313 = arith.addf %311, %312 : vector<2x32xf32>
    %314 = math.tanh %313 : vector<2x32xf32>
    %315 = arith.mulf %310, %314 : vector<2x32xf32>
    %c0_107 = arith.constant 0 : index
    %c7_108 = arith.constant 7 : index
    %316 = vector.load %arg1[%c0_107, %c7_108] : memref<2x8xf32, #tpu.memory_space<vmem>>, vector<2x1xf32>
    %c0_109 = arith.constant 0 : index
    %c0_110 = arith.constant 0 : index
    %317 = vector.load %arg1[%c0_109, %c0_110] : memref<2x8xf32, #tpu.memory_space<vmem>>, vector<2x1xf32>
    %318 = vector.shape_cast %13 : vector<1x32xi1> to vector<1x32xi1>
    %319 = vector.broadcast %318 : vector<1x32xi1> to vector<2x32xi1>
    %320 = vector.shape_cast %316 : vector<2x1xf32> to vector<2x1xf32>
    %321 = vector.broadcast %320 : vector<2x1xf32> to vector<2x32xf32>
    %322 = vector.shape_cast %317 : vector<2x1xf32> to vector<2x1xf32>
    %323 = vector.broadcast %322 : vector<2x1xf32> to vector<2x32xf32>
    %324 = arith.select %319, %321, %323 : vector<2x32xi1>, vector<2x32xf32>
    %cst_111 = arith.constant 5.000000e-01 : f32
    %325 = vector.broadcast %cst_111 : f32 to vector<2x32xf32>
    %326 = arith.cmpf ogt, %324, %325 : vector<2x32xf32>
    %327 = arith.select %326, %315, %288 : vector<2x32xi1>, vector<2x32xf32>
    %328 = arith.mulf %324, %315 : vector<2x32xf32>
    %329 = tpu.concatenate %56, %95, %134, %173, %212, %251, %290, %328 in 0 : vector<2x32xf32>, vector<2x32xf32>, vector<2x32xf32>, vector<2x32xf32>, vector<2x32xf32>, vector<2x32xf32>, vector<2x32xf32>, vector<2x32xf32> -> vector<16x32xf32>
    %330 = arith.truncf %329 : vector<16x32xf32> to vector<16x32xbf16>
    %331 = tpu.concatenate %328, %290, %251, %212, %173, %134, %95, %56 in 0 : vector<2x32xf32>, vector<2x32xf32>, vector<2x32xf32>, vector<2x32xf32>, vector<2x32xf32>, vector<2x32xf32>, vector<2x32xf32>, vector<2x32xf32> -> vector<16x32xf32>
    %332 = arith.truncf %331 : vector<16x32xf32> to vector<16x32xbf16>
    %cst_112 = arith.constant dense<0.000000e+00> : vector<16x32xf32>
    %333 = tpu.matmul %330, %2, %cst_112 {dimension_numbers = #tpu.dot_dimension_numbers<[1], [0], [0], [1], [0, 0, 1, 1], [], []>} : vector<16x32xbf16>, vector<32x32xbf16>, vector<16x32xf32> -> vector<16x32xf32>
    %cst_113 = arith.constant dense<0.000000e+00> : vector<16x32xf32>
    %334 = tpu.matmul %332, %3, %cst_113 {dimension_numbers = #tpu.dot_dimension_numbers<[1], [0], [0], [1], [0, 0, 1, 1], [], []>} : vector<16x32xbf16>, vector<32x32xbf16>, vector<16x32xf32> -> vector<16x32xf32>
    %335 = arith.addf %333, %334 : vector<16x32xf32>
    %336 = vector.broadcast %7 : vector<1x32xf32> to vector<16x32xf32>
    %337 = arith.addf %335, %336 : vector<16x32xf32>
    %cst_114 = arith.constant 0.000000e+00 : f32
    %338 = vector.broadcast %cst_114 : f32 to vector<16x32xf32>
    %339 = arith.maximumf %337, %338 : vector<16x32xf32>
    %340 = arith.truncf %339 : vector<16x32xf32> to vector<16x32xbf16>
    %cst_115 = arith.constant dense<0.000000e+00> : vector<16x2xf32>
    %341 = tpu.matmul %340, %5, %cst_115 {dimension_numbers = #tpu.dot_dimension_numbers<[1], [0], [0], [1], [0, 0, 1, 1], [], []>} : vector<16x32xbf16>, vector<32x2xbf16>, vector<16x2xf32> -> vector<16x2xf32>
    %342 = vector.broadcast %9 : vector<1x2xf32> to vector<16x2xf32>
    %343 = arith.addf %341, %342 : vector<16x2xf32>
    %344 = arith.truncf %327 : vector<2x32xf32> to vector<2x32xbf16>
    %cst_116 = arith.constant dense<0.000000e+00> : vector<2x32xf32>
    %345 = tpu.matmul %344, %1, %cst_116 {dimension_numbers = #tpu.dot_dimension_numbers<[1], [0], [0], [1], [0, 0, 1, 1], [], []>} : vector<2x32xbf16>, vector<32x32xbf16>, vector<2x32xf32> -> vector<2x32xf32>
    %346 = vector.broadcast %6 : vector<1x32xf32> to vector<2x32xf32>
    %347 = arith.addf %345, %346 : vector<2x32xf32>
    %cst_117 = arith.constant 0.000000e+00 : f32
    %348 = vector.broadcast %cst_117 : f32 to vector<2x32xf32>
    %349 = arith.maximumf %347, %348 : vector<2x32xf32>
    %350 = arith.truncf %349 : vector<2x32xf32> to vector<2x32xbf16>
    %cst_118 = arith.constant dense<0.000000e+00> : vector<2x2xf32>
    %351 = tpu.matmul %350, %4, %cst_118 {dimension_numbers = #tpu.dot_dimension_numbers<[1], [0], [0], [1], [0, 0, 1, 1], [], []>} : vector<2x32xbf16>, vector<32x2xbf16>, vector<2x2xf32> -> vector<2x2xf32>
    %352 = vector.broadcast %8 : vector<1x2xf32> to vector<2x2xf32>
    %353 = arith.addf %351, %352 : vector<2x2xf32>
    %354 = tpu.concatenate %343, %353 in 0 : vector<16x2xf32>, vector<2x2xf32> -> vector<18x2xf32>
    %c0_119 = arith.constant 0 : index
    %c0_120 = arith.constant 0 : index
    %355 = vector.load %arg5[%c0_119, %c0_120] : memref<18x2xf32, #tpu.memory_space<vmem>>, vector<18x2xf32>
    tpu.vector_store %arg5[%c0_119, %c0_120], %354 {strides = array<i32>} : memref<18x2xf32, #tpu.memory_space<vmem>>, vector<18x2xf32>,
    return
  }
}

</mosaic_0001>

<llo_original>
// kernel: tpu_custom_call.1
$region0: #{tpu_custom_call.1}
  #allocation0 [shape = 'u32[]', space=smem, size = 0x4, offset = 0x4, fixed_abs, tag = 'smem constant byte address 0x4 - core index']
  #allocation1 [shape = 'u32[72,128]{1,0:T(1,128)}', space=vmem, size = 0x9000, scoped, tag = 'internal scratch']
  %s0 = inlined_call_operand.vmem [shape: f32[8,2,128], index: 0, kind: input, shape index: {}]
  %s1 = inlined_call_operand.vmem [shape: f32[2,8], index: 1, kind: input, shape index: {}]
  %s2 = inlined_call_operand.hbm [shape: bf16[32,224], index: 2, kind: input, shape index: {}]
  %s3 = inlined_call_operand.vmem [shape: bf16[32,4], index: 3, kind: input, shape index: {}]
  %s4 = inlined_call_operand.vmem [shape: f32[1,68], index: 4, kind: input, shape index: {}]
  %s5 = inlined_call_operand.vmem [shape: f32[18,2], index: 5, kind: output, shape index: {}]
  %s6 = sld [smem:[#allocation0]]
  $region34: #{tpu_custom_call.1} parent=0
    _
  %s8 = ssub.s32 1, %s6
  %s9 = scalar_select 0, %s8, %s6
  $region1: #{tpu_custom_call.1} parent=0
    #allocation2 [shape = 'u8[16384]{0}', space=vmem, size = 0x4000, scoped, tag = 'input window, operand 2, single buffered']
    #allocation3 [shape = 's32[1]{0}', space=sflag, size = 0x4, scoped, tag = 'scoped memory for tpu_custom_call.1']
    %10 = vsyncpa [#allocation3], 0
    // Predicated region
    $region2: #{tpu_custom_call.1} parent=1 // pred_check
      _
    $region3: #{tpu_custom_call.1} parent=1 // pred_check_branch
      %12 = sbr.rel (0) target = $region5
    $region4: #{tpu_custom_call.1} parent=1 // pred_region
      _
    $region5: #{tpu_custom_call.1} parent=1 // pred_fallthru
      _
    // Predicated region
    $region6: #{tpu_custom_call.1} parent=1 // pred_check
      _
    $region7: #{tpu_custom_call.1} parent=1 // pred_check_branch
      %14 = sbr.rel (0) target = $region9
    $region8: #{tpu_custom_call.1} parent=1 // pred_region
      _
    $region9: #{tpu_custom_call.1} parent=1 // pred_fallthru
      _
    // Predicated region
    $region10: #{tpu_custom_call.1} parent=1 // pred_check
      _
    $region11: #{tpu_custom_call.1} parent=1 // pred_check_branch
      %16 = sbr.rel (0) target = $region13
    $region12: #{tpu_custom_call.1} parent=1 // pred_region
      %18 = vsyncadd [#allocation3], 0
      %s19 = sshll.u32 %s2, 4
      %s20 = int_to_ptr.hbm [resolvable:$true] %s19
      %s21 = sshll.u32 [#allocation2], 4
      %s22 = int_to_ptr.vmem [resolvable:$true] %s21
      %27 = dma.hbm_to_vmem [thread:$0]  %s20, 512, %s22, [#allocation3], 128, 128, 8
    $region13: #{tpu_custom_call.1} parent=1 // pred_fallthru
      _
    // Predicated region
    $region14: #{tpu_custom_call.1} parent=1 // pred_check
      _
    $region15: #{tpu_custom_call.1} parent=1 // pred_check_branch
      %29 = sbr.rel (0) target = $region17
    $region16: #{tpu_custom_call.1} parent=1 // pred_region
      _
    $region17: #{tpu_custom_call.1} parent=1 // pred_fallthru
      _
    // Predicated region
    $region18: #{tpu_custom_call.1} parent=1 // pred_check
      _
    $region19: #{tpu_custom_call.1} parent=1 // pred_check_branch
      %31 = sbr.rel (0) target = $region21
    $region20: #{tpu_custom_call.1} parent=1 // pred_region
      _
    $region21: #{tpu_custom_call.1} parent=1 // pred_fallthru
      _
    // Predicated region
    $region22: #{tpu_custom_call.1} parent=1 // pred_check
      _
    $region23: #{tpu_custom_call.1} parent=1 // pred_check_branch
      %33 = sbr.rel (0) target = $region25
    $region24: #{tpu_custom_call.1} parent=1 // pred_region
      %35 = dma.done [#allocation3], 512
    $region25: #{tpu_custom_call.1} parent=1 // pred_fallthru
      _
    %v37 = vld [vmem:[#allocation2] sm:$0xf]
    %v38 = vld [vmem:[#allocation2 + $0x8] sm:$0xf]
    %v39 = vld [vmem:[#allocation2 + $0x10] sm:$0xf]
    %v40 = vld [vmem:[#allocation2 + $0x18] sm:$0xf]
    %v41 = vld [vmem:[#allocation2 + $0x4] sm:$0xf]
    %v42 = vld [vmem:[#allocation2 + $0xc] sm:$0xf]
    %v43 = vld [vmem:[#allocation2 + $0x14] sm:$0xf]
    %v44 = vld [vmem:[#allocation2 + $0x1c] sm:$0xf]
    %v45 = vld [vmem:[%s3] sm:$0xf]
    %v46 = vld [vmem:[%s3 + $0x4] sm:$0xf]
    %v47 = vld [vmem:[%s3 + $0x8] sm:$0xf]
    %v48 = vld [vmem:[%s3 + $0xc] sm:$0xf]
    %v49 = vld [vmem:[%s4] sm:$0x1]
    %v50 = vlaneseq
    %v51 = vand.u32 %v50, 127
    %52 = vrot.lane.b32.xlu0 %v51, 32
    %v53 = vpop.permute.xlu0 %52
    %54 = vrot.lane.b32.xlu0 %v51, 64
    %v55 = vpop.permute.xlu0 %54
    %56 = vrot.lane.b32.xlu0 %v51, 96
    %v57 = vpop.permute.xlu0 %56
    %vm58 = vcmask 261120
    %v59 = vsel %vm58, %v51, %v53
    %vm60 = vcmask 523264
    %v61 = vsel %vm60, %v59, %v55
    %vm62 = vcmask 785408
    %v63 = vsel %vm62, %v61, %v57
    %vm64 = vcmp.lt.s32.totalorder %v51, 16
    %vm65 = vcmp.lt.s32.totalorder %v63, 16
    %v66 = vld [vmem:[%s0] sm:$0x3]
    %s67 = scalar_lea.vmem %s0, 14
    %v68 = vld [vmem:[%s67] sm:$0x3]
    %v69 = vsel %vm65, 1, 0
    %v70 = vperm.slane %v69, 0
    %vm71 = vcmp.eq.s32.totalorder %v70, 1
    %v72 = vsel %vm71, %v66, %v68
    %v77 = vunpack.c.l.b16 %v37
    %v78 = vunpack.c.l.b16 %v38
    %v79 = vunpack.c.l.b16 %v39
    %v80 = vunpack.c.l.b16 %v40
    %v81 = vpack.c.b16 %v78, %v77
    %v82 = vpack.c.b16 %v80, %v79
    %v86 = vsel %vm58, 0, 0
    %88 = vmatpush.bf16.msra.mxu0 0
    %89 = vmatpush.bf16.msra.mxu0 0
    %90 = vmatpush.bf16.msra.mxu0 0
    %91 = vmatpush.bf16.msra.mxu0 0
    %92 = vmatpush.bf16.msra.mxu0 0
    %93 = vmatpush.bf16.msra.mxu0 0
    %94 = vmatpush.bf16.msra.mxu0 %v82
    %95 = vmatpush.bf16.msra.mxu0 %v81
    %96 = vmatmul.bf16.gmra.mxu0 %v86
    %v97 = vpop.f32.mrf.mxu0
    %v98 = vadd.f32 0.0, %v97
    %v99 = vpop.f32.mrf.mxu0
    %100 = vdwg.mxu0
    %v101 = vadd.f32 %v72, %v98
    %v102 = vxor.u32 %v101, 2147483648
    %v103 = vmul.f32 %v102, 1.442695
    %v104 = vpow.pop %v103
    %v105 = vadd.f32 %v104, 1.0
    %v106 = vrcp.pop %v105
    %v107 = vmul.f32 %v105, %v106
    %v108 = vsub.f32 1.0, %v107
    %v109 = vmul.f32 %v106, %v108
    %v110 = vadd.f32 %v106, %v109
    %vm111 = vweird.f32 %v105
    %vm112 = vweird.f32 %v106
    %vm113 = vmor %vm111, %vm112
    %v114 = vsel %vm113, %v106, %v110
    %v115 = vand.u32 2147483647, %v105
    %vm116 = vcmp.eq.f32.partialorder %v115, 8.507059e+37
    %v117 = vand.u32 %v105, 2147483648
    %v118 = vor.u32 1.1754944e-38, %v117
    %v119 = vsel %vm116, %v118, %v114
    %v120 = vmul.f32 1.0, %v119
    %v121 = vtanh.pop %v101
    %v122 = vmul.f32 %v120, 0.0
    %124 = vrot.lane.b32.xlu0 %v121, 64
    %v125 = vpop.permute.xlu0 %124
    %v127 = vmul.f32 %v120, %v125
    %129 = vrot.lane.b32.xlu0 %v127, 32
    %v130 = vpop.permute.xlu0 %129
    %v132 = vadd.f32 %v122, %v130
    %v133 = vtanh.pop %v132
    %135 = vrot.lane.b32.xlu0 %v133, 64
    %v136 = vpop.permute.xlu0 %135
    %v138 = vmul.f32 %v120, %v136
    %v139 = vld [vmem:[%s1] sm:$0x3]
    %v140 = vsel %vm64, 1, 0
    %vm141 = vcmp.eq.s32.totalorder %v140, 1
    %143 = vset.pattern.permute.xlu0 0
    %144 = vperm.xlu0 %143, %v139
    %v145 = vpop.permute.xlu0 %144
    %147 = vset.pattern.permute.xlu0 7
    %148 = vperm.xlu0 %147, %v139
    %v149 = vpop.permute.xlu0 %148
    %v151 = vsel %vm141, %v145, %v149
    %vm152 = vcmp.gt.f32.partialorder %v151, 0.5
    %154 = vrot.lane.b32.xlu0 %v138, 32
    %v155 = vpop.permute.xlu0 %154
    %v157 = vsel %vm152, %v155, 0.0
    %159 = vrot.lane.b32.xlu0 %v132, 96
    %v160 = vpop.permute.xlu0 %159
    %v162 = vsel %vm152, %v160, 0.0
    %v163 = vmul.f32 %v151, %v155
    %s164 = scalar_lea.vmem %s0, 2
    %v165 = vld [vmem:[%s164] sm:$0x3]
    %s166 = scalar_lea.vmem %s0, 12
    %v167 = vld [vmem:[%s166] sm:$0x3]
    %v168 = vsel %vm71, %v165, %v167
    %v169 = vpack.c.bf16 %v157, %v157
    %v171 = vsel %vm58, %v169, 0
    %173 = vmatpush.bf16.msra.mxu0 0
    %174 = vmatpush.bf16.msra.mxu0 0
    %175 = vmatpush.bf16.msra.mxu0 0
    %176 = vmatpush.bf16.msra.mxu0 0
    %177 = vmatpush.bf16.msra.mxu0 0
    %178 = vmatpush.bf16.msra.mxu0 0
    %179 = vmatpush.bf16.msra.mxu0 %v82
    %180 = vmatpush.bf16.msra.mxu0 %v81
    %181 = vmatmul.bf16.gmra.mxu0 %v171
    %v182 = vpop.f32.mrf.mxu0
    %v183 = vadd.f32 0.0, %v182
    %v184 = vpop.f32.mrf.mxu0
    %185 = vdwg.mxu0
    %v186 = vadd.f32 %v168, %v183
    %v187 = vxor.u32 %v186, 2147483648
    %v188 = vmul.f32 %v187, 1.442695
    %v189 = vpow.pop %v188
    %v190 = vadd.f32 %v189, 1.0
    %v191 = vrcp.pop %v190
    %v192 = vmul.f32 %v190, %v191
    %v193 = vsub.f32 1.0, %v192
    %v194 = vmul.f32 %v191, %v193
    %v195 = vadd.f32 %v191, %v194
    %vm196 = vweird.f32 %v190
    %vm197 = vweird.f32 %v191
    %vm198 = vmor %vm196, %vm197
    %v199 = vsel %vm198, %v191, %v195
    %v200 = vand.u32 2147483647, %v190
    %vm201 = vcmp.eq.f32.partialorder %v200, 8.507059e+37
    %v202 = vand.u32 %v190, 2147483648
    %v203 = vor.u32 1.1754944e-38, %v202
    %v204 = vsel %vm201, %v203, %v199
    %v205 = vmul.f32 1.0, %v204
    %v206 = vtanh.pop %v186
    %208 = vrot.lane.b32.xlu0 %v162, 32
    %v209 = vpop.permute.xlu0 %208
    %v211 = vmul.f32 %v205, %v209
    %213 = vrot.lane.b32.xlu0 %v206, 64
    %v214 = vpop.permute.xlu0 %213
    %v216 = vmul.f32 %v205, %v214
    %218 = vrot.lane.b32.xlu0 %v216, 32
    %v219 = vpop.permute.xlu0 %218
    %v221 = vadd.f32 %v211, %v219
    %v222 = vtanh.pop %v221
    %224 = vrot.lane.b32.xlu0 %v222, 64
    %v225 = vpop.permute.xlu0 %224
    %v227 = vmul.f32 %v205, %v225
    %228 = vset.pattern.permute.xlu0 1
    %229 = vperm.xlu0 %228, %v139
    %v230 = vpop.permute.xlu0 %229
    %232 = vset.pattern.permute.xlu0 6
    %233 = vperm.xlu0 %232, %v139
    %v234 = vpop.permute.xlu0 %233
    %v236 = vsel %vm141, %v230, %v234
    %vm237 = vcmp.gt.f32.partialorder %v236, 0.5
    %239 = vrot.lane.b32.xlu0 %v227, 32
    %v240 = vpop.permute.xlu0 %239
    %v242 = vsel %vm237, %v240, %v157
    %244 = vrot.lane.b32.xlu0 %v221, 96
    %v245 = vpop.permute.xlu0 %244
    %v247 = vsel %vm237, %v245, %v162
    %v248 = vmul.f32 %v236, %v240
    %s249 = scalar_lea.vmem %s0, 4
    %v250 = vld [vmem:[%s249] sm:$0x3]
    %s251 = scalar_lea.vmem %s0, 10
    %v252 = vld [vmem:[%s251] sm:$0x3]
    %v253 = vsel %vm71, %v250, %v252
    %v254 = vpack.c.bf16 %v242, %v242
    %v256 = vsel %vm58, %v254, 0
    %258 = vmatpush.bf16.msra.mxu0 0
    %259 = vmatpush.bf16.msra.mxu0 0
    %260 = vmatpush.bf16.msra.mxu0 0
    %261 = vmatpush.bf16.msra.mxu0 0
    %262 = vmatpush.bf16.msra.mxu0 0
    %263 = vmatpush.bf16.msra.mxu0 0
    %264 = vmatpush.bf16.msra.mxu0 %v82
    %265 = vmatpush.bf16.msra.mxu0 %v81
    %266 = vmatmul.bf16.gmra.mxu0 %v256
    %v267 = vpop.f32.mrf.mxu0
    %v268 = vadd.f32 0.0, %v267
    %v269 = vpop.f32.mrf.mxu0
    %270 = vdwg.mxu0
    %v271 = vadd.f32 %v253, %v268
    %v272 = vxor.u32 %v271, 2147483648
    %v273 = vmul.f32 %v272, 1.442695
    %v274 = vpow.pop %v273
    %v275 = vadd.f32 %v274, 1.0
    %v276 = vrcp.pop %v275
    %v277 = vmul.f32 %v275, %v276
    %v278 = vsub.f32 1.0, %v277
    %v279 = vmul.f32 %v276, %v278
    %v280 = vadd.f32 %v276, %v279
    %vm281 = vweird.f32 %v275
    %vm282 = vweird.f32 %v276
    %vm283 = vmor %vm281, %vm282
    %v284 = vsel %vm283, %v276, %v280
    %v285 = vand.u32 2147483647, %v275
    %vm286 = vcmp.eq.f32.partialorder %v285, 8.507059e+37
    %v287 = vand.u32 %v275, 2147483648
    %v288 = vor.u32 1.1754944e-38, %v287
    %v289 = vsel %vm286, %v288, %v284
    %v290 = vmul.f32 1.0, %v289
    %v291 = vtanh.pop %v271
    %293 = vrot.lane.b32.xlu0 %v247, 32
    %v294 = vpop.permute.xlu0 %293
    %v296 = vmul.f32 %v290, %v294
    %298 = vrot.lane.b32.xlu0 %v291, 64
    %v299 = vpop.permute.xlu0 %298
    %v301 = vmul.f32 %v290, %v299
    %303 = vrot.lane.b32.xlu0 %v301, 32
    %v304 = vpop.permute.xlu0 %303
    %v306 = vadd.f32 %v296, %v304
    %v307 = vtanh.pop %v306
    %309 = vrot.lane.b32.xlu0 %v307, 64
    %v310 = vpop.permute.xlu0 %309
    %v312 = vmul.f32 %v290, %v310
    %313 = vset.pattern.permute.xlu0 2
    %314 = vperm.xlu0 %313, %v139
    %v315 = vpop.permute.xlu0 %314
    %317 = vset.pattern.permute.xlu0 5
    %318 = vperm.xlu0 %317, %v139
    %v319 = vpop.permute.xlu0 %318
    %v321 = vsel %vm141, %v315, %v319
    %vm322 = vcmp.gt.f32.partialorder %v321, 0.5
    %324 = vrot.lane.b32.xlu0 %v312, 32
    %v325 = vpop.permute.xlu0 %324
    %v327 = vsel %vm322, %v325, %v242
    %329 = vrot.lane.b32.xlu0 %v306, 96
    %v330 = vpop.permute.xlu0 %329
    %v332 = vsel %vm322, %v330, %v247
    %v333 = vmul.f32 %v321, %v325
    %s334 = scalar_lea.vmem %s0, 6
    %v335 = vld [vmem:[%s334] sm:$0x3]
    %s336 = scalar_lea.vmem %s0, 8
    %v337 = vld [vmem:[%s336] sm:$0x3]
    %v338 = vsel %vm71, %v335, %v337
    %v339 = vpack.c.bf16 %v327, %v327
    %v341 = vsel %vm58, %v339, 0
    %343 = vmatpush.bf16.msra.mxu0 0
    %344 = vmatpush.bf16.msra.mxu0 0
    %345 = vmatpush.bf16.msra.mxu0 0
    %346 = vmatpush.bf16.msra.mxu0 0
    %347 = vmatpush.bf16.msra.mxu0 0
    %348 = vmatpush.bf16.msra.mxu0 0
    %349 = vmatpush.bf16.msra.mxu0 %v82
    %350 = vmatpush.bf16.msra.mxu0 %v81
    %351 = vmatmul.bf16.gmra.mxu0 %v341
    %v352 = vpop.f32.mrf.mxu0
    %v353 = vadd.f32 0.0, %v352
    %v354 = vpop.f32.mrf.mxu0
    %355 = vdwg.mxu0
    %v356 = vadd.f32 %v338, %v353
    %v357 = vxor.u32 %v356, 2147483648
    %v358 = vmul.f32 %v357, 1.442695
    %v359 = vpow.pop %v358
    %v360 = vadd.f32 %v359, 1.0
    %v361 = vrcp.pop %v360
    %v362 = vmul.f32 %v360, %v361
    %v363 = vsub.f32 1.0, %v362
    %v364 = vmul.f32 %v361, %v363
    %v365 = vadd.f32 %v361, %v364
    %vm366 = vweird.f32 %v360
    %vm367 = vweird.f32 %v361
    %vm368 = vmor %vm366, %vm367
    %v369 = vsel %vm368, %v361, %v365
    %v370 = vand.u32 2147483647, %v360
    %vm371 = vcmp.eq.f32.partialorder %v370, 8.507059e+37
    %v372 = vand.u32 %v360, 2147483648
    %v373 = vor.u32 1.1754944e-38, %v372
    %v374 = vsel %vm371, %v373, %v369
    %v375 = vmul.f32 1.0, %v374
    %v376 = vtanh.pop %v356
    %378 = vrot.lane.b32.xlu0 %v332, 32
    %v379 = vpop.permute.xlu0 %378
    %v381 = vmul.f32 %v375, %v379
    %383 = vrot.lane.b32.xlu0 %v376, 64
    %v384 = vpop.permute.xlu0 %383
    %v386 = vmul.f32 %v375, %v384
    %388 = vrot.lane.b32.xlu0 %v386, 32
    %v389 = vpop.permute.xlu0 %388
    %v391 = vadd.f32 %v381, %v389
    %v392 = vtanh.pop %v391
    %394 = vrot.lane.b32.xlu0 %v392, 64
    %v395 = vpop.permute.xlu0 %394
    %v397 = vmul.f32 %v375, %v395
    %398 = vset.pattern.permute.xlu0 3
    %399 = vperm.xlu0 %398, %v139
    %v400 = vpop.permute.xlu0 %399
    %402 = vset.pattern.permute.xlu0 4
    %403 = vperm.xlu0 %402, %v139
    %v404 = vpop.permute.xlu0 %403
    %v406 = vsel %vm141, %v400, %v404
    %vm407 = vcmp.gt.f32.partialorder %v406, 0.5
    %409 = vrot.lane.b32.xlu0 %v397, 32
    %v410 = vpop.permute.xlu0 %409
    %v412 = vsel %vm407, %v410, %v327
    %414 = vrot.lane.b32.xlu0 %v391, 96
    %v415 = vpop.permute.xlu0 %414
    %v417 = vsel %vm407, %v415, %v332
    %v418 = vmul.f32 %v406, %v410
    %v419 = vsel %vm71, %v337, %v335
    %v420 = vpack.c.bf16 %v412, %v412
    %v422 = vsel %vm58, %v420, 0
    %424 = vmatpush.bf16.msra.mxu0 0
    %425 = vmatpush.bf16.msra.mxu0 0
    %426 = vmatpush.bf16.msra.mxu0 0
    %427 = vmatpush.bf16.msra.mxu0 0
    %428 = vmatpush.bf16.msra.mxu0 0
    %429 = vmatpush.bf16.msra.mxu0 0
    %430 = vmatpush.bf16.msra.mxu0 %v82
    %431 = vmatpush.bf16.msra.mxu0 %v81
    %432 = vmatmul.bf16.gmra.mxu0 %v422
    %v433 = vpop.f32.mrf.mxu0
    %v434 = vadd.f32 0.0, %v433
    %v435 = vpop.f32.mrf.mxu0
    %436 = vdwg.mxu0
    %v437 = vadd.f32 %v419, %v434
    %v438 = vxor.u32 %v437, 2147483648
    %v439 = vmul.f32 %v438, 1.442695
    %v440 = vpow.pop %v439
    %v441 = vadd.f32 %v440, 1.0
    %v442 = vrcp.pop %v441
    %v443 = vmul.f32 %v441, %v442
    %v444 = vsub.f32 1.0, %v443
    %v445 = vmul.f32 %v442, %v444
    %v446 = vadd.f32 %v442, %v445
    %vm447 = vweird.f32 %v441
    %vm448 = vweird.f32 %v442
    %vm449 = vmor %vm447, %vm448
    %v450 = vsel %vm449, %v442, %v446
    %v451 = vand.u32 2147483647, %v441
    %vm452 = vcmp.eq.f32.partialorder %v451, 8.507059e+37
    %v453 = vand.u32 %v441, 2147483648
    %v454 = vor.u32 1.1754944e-38, %v453
    %v455 = vsel %vm452, %v454, %v450
    %v456 = vmul.f32 1.0, %v455
    %v457 = vtanh.pop %v437
    %459 = vrot.lane.b32.xlu0 %v417, 32
    %v460 = vpop.permute.xlu0 %459
    %v462 = vmul.f32 %v456, %v460
    %464 = vrot.lane.b32.xlu0 %v457, 64
    %v465 = vpop.permute.xlu0 %464
    %v467 = vmul.f32 %v456, %v465
    %469 = vrot.lane.b32.xlu0 %v467, 32
    %v470 = vpop.permute.xlu0 %469
    %v472 = vadd.f32 %v462, %v470
    %v473 = vtanh.pop %v472
    %475 = vrot.lane.b32.xlu0 %v473, 64
    %v476 = vpop.permute.xlu0 %475
    %v478 = vmul.f32 %v456, %v476
    %v479 = vsel %vm141, %v404, %v400
    %vm480 = vcmp.gt.f32.partialorder %v479, 0.5
    %482 = vrot.lane.b32.xlu0 %v478, 32
    %v483 = vpop.permute.xlu0 %482
    %v485 = vsel %vm480, %v483, %v412
    %487 = vrot.lane.b32.xlu0 %v472, 96
    %v488 = vpop.permute.xlu0 %487
    %v490 = vsel %vm480, %v488, %v417
    %v491 = vmul.f32 %v479, %v483
    %v492 = vsel %vm71, %v252, %v250
    %v493 = vpack.c.bf16 %v485, %v485
    %v495 = vsel %vm58, %v493, 0
    %497 = vmatpush.bf16.msra.mxu0 0
    %498 = vmatpush.bf16.msra.mxu0 0
    %499 = vmatpush.bf16.msra.mxu0 0
    %500 = vmatpush.bf16.msra.mxu0 0
    %501 = vmatpush.bf16.msra.mxu0 0
    %502 = vmatpush.bf16.msra.mxu0 0
    %503 = vmatpush.bf16.msra.mxu0 %v82
    %504 = vmatpush.bf16.msra.mxu0 %v81
    %505 = vmatmul.bf16.gmra.mxu0 %v495
    %v506 = vpop.f32.mrf.mxu0
    %v507 = vadd.f32 0.0, %v506
    %v508 = vpop.f32.mrf.mxu0
    %509 = vdwg.mxu0
    %v510 = vadd.f32 %v492, %v507
    %v511 = vxor.u32 %v510, 2147483648
    %v512 = vmul.f32 %v511, 1.442695
    %v513 = vpow.pop %v512
    %v514 = vadd.f32 %v513, 1.0
    %v515 = vrcp.pop %v514
    %v516 = vmul.f32 %v514, %v515
    %v517 = vsub.f32 1.0, %v516
    %v518 = vmul.f32 %v515, %v517
    %v519 = vadd.f32 %v515, %v518
    %vm520 = vweird.f32 %v514
    %vm521 = vweird.f32 %v515
    %vm522 = vmor %vm520, %vm521
    %v523 = vsel %vm522, %v515, %v519
    %v524 = vand.u32 2147483647, %v514
    %vm525 = vcmp.eq.f32.partialorder %v524, 8.507059e+37
    %v526 = vand.u32 %v514, 2147483648
    %v527 = vor.u32 1.1754944e-38, %v526
    %v528 = vsel %vm525, %v527, %v523
    %v529 = vmul.f32 1.0, %v528
    %v530 = vtanh.pop %v510
    %532 = vrot.lane.b32.xlu0 %v490, 32
    %v533 = vpop.permute.xlu0 %532
    %v535 = vmul.f32 %v529, %v533
    %537 = vrot.lane.b32.xlu0 %v530, 64
    %v538 = vpop.permute.xlu0 %537
    %v540 = vmul.f32 %v529, %v538
    %542 = vrot.lane.b32.xlu0 %v540, 32
    %v543 = vpop.permute.xlu0 %542
    %v545 = vadd.f32 %v535, %v543
    %v546 = vtanh.pop %v545
    %548 = vrot.lane.b32.xlu0 %v546, 64
    %v549 = vpop.permute.xlu0 %548
    %v551 = vmul.f32 %v529, %v549
    %v552 = vsel %vm141, %v319, %v315
    %vm553 = vcmp.gt.f32.partialorder %v552, 0.5
    %555 = vrot.lane.b32.xlu0 %v551, 32
    %v556 = vpop.permute.xlu0 %555
    %v558 = vsel %vm553, %v556, %v485
    %560 = vrot.lane.b32.xlu0 %v545, 96
    %v561 = vpop.permute.xlu0 %560
    %v563 = vsel %vm553, %v561, %v490
    %v564 = vmul.f32 %v552, %v556
    %v565 = vsel %vm71, %v167, %v165
    %v566 = vpack.c.bf16 %v558, %v558
    %v568 = vsel %vm58, %v566, 0
    %570 = vmatpush.bf16.msra.mxu0 0
    %571 = vmatpush.bf16.msra.mxu0 0
    %572 = vmatpush.bf16.msra.mxu0 0
    %573 = vmatpush.bf16.msra.mxu0 0
    %574 = vmatpush.bf16.msra.mxu0 0
    %575 = vmatpush.bf16.msra.mxu0 0
    %576 = vmatpush.bf16.msra.mxu0 %v82
    %577 = vmatpush.bf16.msra.mxu0 %v81
    %578 = vmatmul.bf16.gmra.mxu0 %v568
    %v579 = vpop.f32.mrf.mxu0
    %v580 = vadd.f32 0.0, %v579
    %v581 = vpop.f32.mrf.mxu0
    %582 = vdwg.mxu0
    %v583 = vadd.f32 %v565, %v580
    %v584 = vxor.u32 %v583, 2147483648
    %v585 = vmul.f32 %v584, 1.442695
    %v586 = vpow.pop %v585
    %v587 = vadd.f32 %v586, 1.0
    %v588 = vrcp.pop %v587
    %v589 = vmul.f32 %v587, %v588
    %v590 = vsub.f32 1.0, %v589
    %v591 = vmul.f32 %v588, %v590
    %v592 = vadd.f32 %v588, %v591
    %vm593 = vweird.f32 %v587
    %vm594 = vweird.f32 %v588
    %vm595 = vmor %vm593, %vm594
    %v596 = vsel %vm595, %v588, %v592
    %v597 = vand.u32 2147483647, %v587
    %vm598 = vcmp.eq.f32.partialorder %v597, 8.507059e+37
    %v599 = vand.u32 %v587, 2147483648
    %v600 = vor.u32 1.1754944e-38, %v599
    %v601 = vsel %vm598, %v600, %v596
    %v602 = vmul.f32 1.0, %v601
    %v603 = vtanh.pop %v583
    %605 = vrot.lane.b32.xlu0 %v563, 32
    %v606 = vpop.permute.xlu0 %605
    %v608 = vmul.f32 %v602, %v606
    %610 = vrot.lane.b32.xlu0 %v603, 64
    %v611 = vpop.permute.xlu0 %610
    %v613 = vmul.f32 %v602, %v611
    %615 = vrot.lane.b32.xlu0 %v613, 32
    %v616 = vpop.permute.xlu0 %615
    %v618 = vadd.f32 %v608, %v616
    %v619 = vtanh.pop %v618
    %621 = vrot.lane.b32.xlu0 %v619, 64
    %v622 = vpop.permute.xlu0 %621
    %v624 = vmul.f32 %v602, %v622
    %v625 = vsel %vm141, %v234, %v230
    %vm626 = vcmp.gt.f32.partialorder %v625, 0.5
    %628 = vrot.lane.b32.xlu0 %v624, 32
    %v629 = vpop.permute.xlu0 %628
    %v631 = vsel %vm626, %v629, %v558
    %633 = vrot.lane.b32.xlu0 %v618, 96
    %v634 = vpop.permute.xlu0 %633
    %v636 = vsel %vm626, %v634, %v563
    %v637 = vmul.f32 %v625, %v629
    %v638 = vsel %vm71, %v68, %v66
    %v639 = vpack.c.bf16 %v631, %v631
    %v641 = vsel %vm58, %v639, 0
    %643 = vmatpush.bf16.msra.mxu0 0
    %644 = vmatpush.bf16.msra.mxu0 0
    %645 = vmatpush.bf16.msra.mxu0 0
    %646 = vmatpush.bf16.msra.mxu0 0
    %647 = vmatpush.bf16.msra.mxu0 0
    %648 = vmatpush.bf16.msra.mxu0 0
    %649 = vmatpush.bf16.msra.mxu0 %v82
    %650 = vmatpush.bf16.msra.mxu0 %v81
    %651 = vmatmul.bf16.gmra.mxu0 %v641
    %v652 = vpop.f32.mrf.mxu0
    %v653 = vadd.f32 0.0, %v652
    %v654 = vpop.f32.mrf.mxu0
    %655 = vdwg.mxu0
    %v656 = vadd.f32 %v638, %v653
    %v657 = vxor.u32 %v656, 2147483648
    %v658 = vmul.f32 %v657, 1.442695
    %v659 = vpow.pop %v658
    %v660 = vadd.f32 %v659, 1.0
    %v661 = vrcp.pop %v660
    %v662 = vmul.f32 %v660, %v661
    %v663 = vsub.f32 1.0, %v662
    %v664 = vmul.f32 %v661, %v663
    %v665 = vadd.f32 %v661, %v664
    %vm666 = vweird.f32 %v660
    %vm667 = vweird.f32 %v661
    %vm668 = vmor %vm666, %vm667
    %v669 = vsel %vm668, %v661, %v665
    %v670 = vand.u32 2147483647, %v660
    %vm671 = vcmp.eq.f32.partialorder %v670, 8.507059e+37
    %v672 = vand.u32 %v660, 2147483648
    %v673 = vor.u32 1.1754944e-38, %v672
    %v674 = vsel %vm671, %v673, %v669
    %v675 = vmul.f32 1.0, %v674
    %v676 = vtanh.pop %v656
    %678 = vrot.lane.b32.xlu0 %v636, 32
    %v679 = vpop.permute.xlu0 %678
    %v681 = vmul.f32 %v675, %v679
    %683 = vrot.lane.b32.xlu0 %v676, 64
    %v684 = vpop.permute.xlu0 %683
    %v686 = vmul.f32 %v675, %v684
    %688 = vrot.lane.b32.xlu0 %v686, 32
    %v689 = vpop.permute.xlu0 %688
    %v691 = vadd.f32 %v681, %v689
    %v692 = vtanh.pop %v691
    %694 = vrot.lane.b32.xlu0 %v692, 64
    %v695 = vpop.permute.xlu0 %694
    %v697 = vmul.f32 %v675, %v695
    %v698 = vsel %vm141, %v149, %v145
    %vm699 = vcmp.gt.f32.partialorder %v698, 0.5
    %701 = vrot.lane.b32.xlu0 %v697, 32
    %v702 = vpop.permute.xlu0 %701
    %v704 = vsel %vm699, %v702, %v631
    %v705 = vmul.f32 %v698, %v702
    %v707 = vrot.slane %v248, 6
    %v710 = vrot.slane %v333, 4
    %v713 = vrot.slane %v418, 2
    %v716 = vrot.slane %v564, 6
    %v719 = vrot.slane %v637, 4
    %v722 = vrot.slane %v705, 2
    %vm724 = vcmask 1041408
    %v725 = vsel %vm724, %v163, %v707
    %vm726 = vcmask 1043456
    %v727 = vsel %vm726, %v725, %v710
    %vm728 = vcmask 1045504
    %v729 = vsel %vm728, %v727, %v713
    %v730 = vsel %vm724, %v491, %v716
    %v731 = vsel %vm726, %v730, %v719
    %v732 = vsel %vm728, %v731, %v722
    %v733 = vpack.c.bf16 %v732, %v729
    %v734 = vrot.slane %v637, 6
    %v736 = vrot.slane %v564, 4
    %v739 = vrot.slane %v491, 2
    %v741 = vrot.slane %v333, 6
    %v743 = vrot.slane %v248, 4
    %v746 = vrot.slane %v163, 2
    %v748 = vsel %vm724, %v705, %v734
    %v749 = vsel %vm726, %v748, %v736
    %v750 = vsel %vm728, %v749, %v739
    %v751 = vsel %vm724, %v418, %v741
    %v752 = vsel %vm726, %v751, %v743
    %v753 = vsel %vm728, %v752, %v746
    %v754 = vpack.c.bf16 %v753, %v750
    %v759 = vunpack.c.l.b16 %v41
    %v760 = vunpack.c.l.b16 %v42
    %v761 = vunpack.c.l.b16 %v43
    %v762 = vunpack.c.l.b16 %v44
    %v763 = vpack.c.b16 %v760, %v759
    %v764 = vpack.c.b16 %v762, %v761
    %765 = vrot.lane.b32.xlu0 %v763, 64
    %v766 = vpop.permute.xlu0 %765
    %767 = vrot.lane.b32.xlu0 %v764, 64
    %v768 = vpop.permute.xlu0 %767
    %v772 = vsel %vm58, %v754, 0
    %774 = vmatpush.bf16.msra.mxu0 0
    %775 = vmatpush.bf16.msra.mxu0 0
    %776 = vmatpush.bf16.msra.mxu0 0
    %777 = vmatpush.bf16.msra.mxu0 0
    %778 = vmatpush.bf16.msra.mxu0 0
    %779 = vmatpush.bf16.msra.mxu0 0
    %780 = vmatpush.bf16.msra.mxu0 %v768
    %781 = vmatpush.bf16.msra.mxu0 %v766
    %782 = vmatmul.bf16.gmra.mxu0 %v772
    %v783 = vpop.f32.mrf.mxu0
    %v784 = vadd.f32 0.0, %v783
    %v785 = vpop.f32.mrf.mxu0
    %v786 = vadd.f32 0.0, %v785
    %787 = vdwg.mxu0
    %788 = vrot.lane.b32.xlu0 %v763, 96
    %v789 = vpop.permute.xlu0 %788
    %790 = vrot.lane.b32.xlu0 %v764, 96
    %v791 = vpop.permute.xlu0 %790
    %v795 = vsel %vm58, %v733, 0
    %797 = vmatpush.bf16.msra.mxu0 0
    %798 = vmatpush.bf16.msra.mxu0 0
    %799 = vmatpush.bf16.msra.mxu0 0
    %800 = vmatpush.bf16.msra.mxu0 0
    %801 = vmatpush.bf16.msra.mxu0 0
    %802 = vmatpush.bf16.msra.mxu0 0
    %803 = vmatpush.bf16.msra.mxu0 %v791
    %804 = vmatpush.bf16.msra.mxu0 %v789
    %805 = vmatmul.bf16.gmra.mxu0 %v795
    %v806 = vpop.f32.mrf.mxu0
    %v807 = vadd.f32 %v784, %v806
    %v808 = vpop.f32.mrf.mxu0
    %v809 = vadd.f32 %v786, %v808
    %810 = vdwg.mxu0
    %v812 = vperm.slane %v49, 0
    %813 = vrot.lane.b32.xlu0 %v812, 96
    %v814 = vpop.permute.xlu0 %813
    %v816 = vadd.f32 %v807, %v814
    %v817 = vadd.f32 %v809, %v814
    %v818 = vmax.f32 %v816, 0.0
    %v819 = vmax.f32 %v817, 0.0
    %v820 = vpack.c.bf16 %v819, %v818
    %v825 = vunpack.c.l.b16 %v45
    %v826 = vunpack.c.l.b16 %v46
    %v827 = vunpack.c.l.b16 %v47
    %v828 = vunpack.c.l.b16 %v48
    %v829 = vpack.c.b16 %v826, %v825
    %v830 = vpack.c.b16 %v828, %v827
    %831 = vrot.lane.b32.xlu0 %v829, 126
    %v832 = vpop.permute.xlu0 %831
    %833 = vrot.lane.b32.xlu0 %v830, 126
    %v834 = vpop.permute.xlu0 %833
    %837 = vrot.lane.b32.xlu0 %v812, 62
    %v838 = vpop.permute.xlu0 %837
    %v841 = vsel %vm58, %v820, 0
    %843 = vmatpush.bf16.msra.mxu0 0
    %844 = vmatpush.bf16.msra.mxu0 0
    %845 = vmatpush.bf16.msra.mxu0 0
    %846 = vmatpush.bf16.msra.mxu0 0
    %847 = vmatpush.bf16.msra.mxu0 0
    %848 = vmatpush.bf16.msra.mxu0 0
    %849 = vmatpush.bf16.msra.mxu0 %v834
    %850 = vmatpush.bf16.msra.mxu0 %v832
    %851 = vmatmul.bf16.gmra.mxu0 %v841
    %v852 = vpop.f32.mrf.mxu0
    %v853 = vadd.f32 %v838, %v852
    %v854 = vpop.f32.mrf.mxu0
    %v855 = vadd.f32 %v838, %v854
    %856 = vdwg.mxu0
    %v857 = vpack.c.bf16 %v704, %v704
    %v862 = vsel %vm58, %v857, 0
    %864 = vmatpush.bf16.msra.mxu0 0
    %865 = vmatpush.bf16.msra.mxu0 0
    %866 = vmatpush.bf16.msra.mxu0 0
    %867 = vmatpush.bf16.msra.mxu0 0
    %868 = vmatpush.bf16.msra.mxu0 0
    %869 = vmatpush.bf16.msra.mxu0 0
    %870 = vmatpush.bf16.msra.mxu0 %v764
    %871 = vmatpush.bf16.msra.mxu0 %v763
    %872 = vmatmul.bf16.gmra.mxu0 %v862
    %v873 = vpop.f32.mrf.mxu0
    %v874 = vadd.f32 %v812, %v873
    %v875 = vpop.f32.mrf.mxu0
    %876 = vdwg.mxu0
    %v877 = vmax.f32 %v874, 0.0
    %v878 = vpack.c.bf16 %v877, %v877
    %881 = vrot.lane.b32.xlu0 %v812, 64
    %v882 = vpop.permute.xlu0 %881
    %v885 = vsel %vm58, %v878, 0
    %887 = vmatpush.bf16.msra.mxu0 0
    %888 = vmatpush.bf16.msra.mxu0 0
    %889 = vmatpush.bf16.msra.mxu0 0
    %890 = vmatpush.bf16.msra.mxu0 0
    %891 = vmatpush.bf16.msra.mxu0 0
    %892 = vmatpush.bf16.msra.mxu0 0
    %893 = vmatpush.bf16.msra.mxu0 %v830
    %894 = vmatpush.bf16.msra.mxu0 %v829
    %895 = vmatmul.bf16.gmra.mxu0 %v885
    %v896 = vpop.f32.mrf.mxu0
    %v897 = vadd.f32 %v882, %v896
    %v898 = vpop.f32.mrf.mxu0
    %899 = vdwg.mxu0
    %vm900 = vcmask 15360
    %901 = vst.msk [vmem:[%s5] sm:$0xff] %vm900, %v853
    %902 = vst.msk [vmem:[%s5 + $0x8] sm:$0xff] %vm900, %v855
    %vm903 = vcmask 9216
    %904 = vst.msk [vmem:[%s5 + $0x10] sm:$0x3] %vm903, %v897
    // Predicated region
    $region26: #{tpu_custom_call.1} parent=1 // pred_check
      _
    $region27: #{tpu_custom_call.1} parent=1 // pred_check_branch
      %906 = sbr.rel (0) target = $region29
    $region28: #{tpu_custom_call.1} parent=1 // pred_region
      _
    $region29: #{tpu_custom_call.1} parent=1 // pred_fallthru
      _
    // Predicated region
    $region30: #{tpu_custom_call.1} parent=1 // pred_check
      _
    $region31: #{tpu_custom_call.1} parent=1 // pred_check_branch
      %908 = sbr.rel (0) target = $region33
    $region32: #{tpu_custom_call.1} parent=1 // pred_region
      _
    $region33: #{tpu_custom_call.1} parent=1 // pred_fallthru
      _
    %909 = vsyncpa [#allocation3], 1

</llo_original>
